<compile_context>
chip_gen: v7x
topology: tpu7x:2x2x1
jax: 0.10.0
libtpu: 0.0.40
codegen_flags: <defaults>
</compile_context>

<pallas_src>
import jax
import jax.numpy as jnp
from jax.experimental import pallas as pl
from jax.experimental.pallas import tpu as pltpu

_LANES = 128
_GROUP = 32                      # lane stride between the 4 pool-offset groups
_VMEM_LIMIT = 32 * 1024 * 1024


def _round_up(x, m):
    return (x + m - 1) // m * m


def _pick_tile(m_rows, max_tile):
    """Row-tile: multiple of 8, capped, and split so the grid has >= 2 steps
    whenever the (padded) row count allows it."""
    m8 = _round_up(max(m_rows, 8), 8)
    tile = min(max_tile, m8)
    if tile == m8 and m8 >= 16:
        tile = _round_up(m8 // 2, 8)
    return tile


# ----------------------------------------------------------------------------
# Pallas kernels
# ----------------------------------------------------------------------------
def _conv_relu_pool_kernel(p_ref, w_ref, b_ref, o_ref):
    """Fused conv (windowed matmul) + 2x2 max-pool + bias + ReLU.

    p_ref: [tm, K]    bf16 6x6-window patches, one row per *pooled* output pixel
    w_ref: [K, 128]   bf16 fused weights: 4 pool-offset groups at lanes 0/32/64/96
    b_ref: [1, 128]   f32 bias (real bias in lanes 0..cout-1, zeros elsewhere)
    o_ref: [tm, 128]  bf16 pooled activations (valid channels in lanes 0..cout-1)
    """
    y = jnp.dot(p_ref[...], w_ref[...], preferred_element_type=jnp.float32)
    # Max-reduce the 4 lane groups (stride 32) into lanes 0..31: two XLU rolls +
    # VPU maxes.  Group layout tiles the full 128-lane vreg, so the rotation
    # direction is immaterial.
    y = jnp.maximum(y, pltpu.roll(y, 2 * _GROUP, 1))
    y = jnp.maximum(y, pltpu.roll(y, _GROUP, 1))
    # relu(max_q(conv_q) + b) == maxpool(relu(conv + b)): same bias, monotone ops.
    o_ref[...] = jnp.maximum(y + b_ref[...], 0.0).astype(o_ref.dtype)


def _linear_softmax_kernel(x_ref, w_ref, b_ref, o_ref):
    """Linear + softmax.  Padded logit lanes carry a -1e30 bias -> probability 0."""
    logits = jnp.dot(x_ref[...], w_ref[...], preferred_element_type=jnp.float32)
    logits = logits + b_ref[...]
    mx = jnp.max(logits, axis=-1, keepdims=True)
    e = jnp.exp(logits - mx)
    inv = pl.reciprocal(jnp.sum(e, axis=-1, keepdims=True), approx=False)
    o_ref[...] = (e * inv).astype(o_ref.dtype)


# ----------------------------------------------------------------------------
# pallas_call wrappers
# ----------------------------------------------------------------------------
def conv_relu_pool(patches, wmat, bias, cout, max_tile=2048):
    """patches [M, K] bf16, wmat [K, 128] bf16, bias [cout] -> pooled acts [M, cout]."""
    m, k = patches.shape
    tm = _pick_tile(m, max_tile)
    mp = _round_up(m, tm)
    p = patches if mp == m else jnp.pad(patches, ((0, mp - m), (0, 0)))
    b = jnp.zeros((1, _LANES), jnp.float32).at[0, :cout].set(bias.astype(jnp.float32))

    cost = pl.CostEstimate(
        flops=2 * mp * k * _LANES,
        transcendentals=0,
        bytes_accessed=p.size * 2 + wmat.size * 2 + b.size * 4 + mp * _LANES * 2)

    out = pl.pallas_call(
        _conv_relu_pool_kernel,
        out_shape=jax.ShapeDtypeStruct((mp, _LANES), jnp.bfloat16),
        grid=(mp // tm,),
        in_specs=[
            pl.BlockSpec((tm, k), lambda i: (i, 0)),        # K = full dim (no HBM pad)
            pl.BlockSpec((k, _LANES), lambda i: (0, 0)),
            pl.BlockSpec((1, _LANES), lambda i: (0, 0)),
        ],
        out_specs=pl.BlockSpec((tm, _LANES), lambda i: (i, 0)),
        compiler_params=pltpu.CompilerParams(
            dimension_semantics=("parallel",),
            vmem_limit_bytes=_VMEM_LIMIT),
        cost_estimate=cost,
    )(p, wmat, b)
    return out[:m, :cout]


def linear_softmax(x, w, b, max_tile=512):
    """x [B, K], w [K, N], b [N] -> softmax(x @ w + b, axis=-1) as f32 [B, N]."""
    bsz, k = x.shape
    n = w.shape[1]
    tb = _pick_tile(bsz, max_tile)
    bp = _round_up(bsz, tb)
    xp = (x if bp == bsz else jnp.pad(x, ((0, bp - bsz), (0, 0)))).astype(jnp.bfloat16)
    wp = jnp.pad(w.astype(jnp.bfloat16), ((0, 0), (0, _LANES - n)))
    bpad = jnp.full((1, _LANES), -1e30, jnp.float32).at[0, :n].set(b.astype(jnp.float32))

    cost = pl.CostEstimate(
        flops=2 * bp * k * _LANES,
        transcendentals=bp * _LANES,
        bytes_accessed=xp.size * 2 + wp.size * 2 + bpad.size * 4 + bp * _LANES * 4)

    out = pl.pallas_call(
        _linear_softmax_kernel,
        out_shape=jax.ShapeDtypeStruct((bp, _LANES), jnp.float32),
        grid=(bp // tb,),
        in_specs=[
            pl.BlockSpec((tb, k), lambda i: (i, 0)),
            pl.BlockSpec((k, _LANES), lambda i: (0, 0)),
            pl.BlockSpec((1, _LANES), lambda i: (0, 0)),
        ],
        out_specs=pl.BlockSpec((tb, _LANES), lambda i: (i, 0)),
        compiler_params=pltpu.CompilerParams(
            dimension_semantics=("parallel",),
            vmem_limit_bytes=_VMEM_LIMIT),
        cost_estimate=cost,
    )(xp, wp, bpad)
    return out[:bsz, :n]


# ----------------------------------------------------------------------------
# Plain-JAX glue: pooled-window im2col + weight preparation
# ----------------------------------------------------------------------------
def im2col_pool_window(x_nhwc, ksize=5, pad=2, pool=2):
    """One bf16 row per *pooled* output pixel: its (ksize+pool-1)^2 input window.

    Returns patches [B*Ho*Wo, win*win*C] (rows in (b, i, j) order, feature order
    (wy, wx, cin)) and the pooled spatial shape.  9x inflation instead of the 25x
    of per-conv-pixel im2col; bf16 cast is folded in so no separate pad/cast pass.
    """
    B, H, W, C = x_nhwc.shape
    Ho, Wo = H // pool, W // pool
    win = ksize + pool - 1
    xp = jnp.pad(x_nhwc, ((0, 0), (pad, pad), (pad, pad), (0, 0))).astype(jnp.bfloat16)
    taps = [xp[:, wy:wy + pool * (Ho - 1) + 1:pool,
               wx:wx + pool * (Wo - 1) + 1:pool, :]
            for wy in range(win) for wx in range(win)]
    patches = jnp.stack(taps, axis=3)                        # [B, Ho, Wo, win*win, C]
    patches = patches.reshape(B * Ho * Wo, win * win * C)
    return patches, (B, Ho, Wo)


def conv_w_to_fused_mat(w_oihw, ksize=5, pool=2):
    """[Cout, Cin, kh, kw] -> [win*win*Cin, 128] bf16: the 4 pool-offset-shifted
    weight matrices concatenated along lanes with stride 32 (one MXU push total)."""
    cout, cin, kh, kw = w_oihw.shape
    win = ksize + pool - 1
    w_hwio = jnp.transpose(w_oihw, (2, 3, 1, 0))             # [kh, kw, cin, cout]
    mat = jnp.zeros((win, win, cin, pool * pool * _GROUP), jnp.float32)
    q = 0
    for a in range(pool):
        for b in range(pool):
            mat = mat.at[a:a + kh, b:b + kw, :, q * _GROUP:q * _GROUP + cout].set(w_hwio)
            q += 1
    return mat.reshape(win * win * cin, pool * pool * _GROUP).astype(jnp.bfloat16)


def fc_weight_nhwc(fc_w, h, w, c):
    """PyTorch Linear weight [N, C*H*W] (NCHW flatten) -> [H*W*C, N] (NHWC flatten)."""
    n = fc_w.shape[0]
    return jnp.transpose(fc_w.reshape(n, c, h, w), (2, 3, 1, 0)).reshape(h * w * c, n)


# ----------------------------------------------------------------------------
# Full forward pass (mirrors CNN.forward)
# ----------------------------------------------------------------------------
@jax.jit
def cnn_forward(x_nchw, params):
    x = jnp.transpose(x_nchw, (0, 2, 3, 1)).astype(jnp.float32)   # NCHW -> NHWC

    # conv1: Conv2d(1, 16, 5, 1, 2) + ReLU + MaxPool2d(2)
    p1, (B, H1, W1) = im2col_pool_window(x)                       # [B*196, 36]
    y1 = conv_relu_pool(p1, conv_w_to_fused_mat(params["conv1_w"]),
                        params["conv1_b"], cout=16)
    x1 = y1.reshape(B, H1, W1, 16)                                # [B,14,14,16] bf16

    # conv2: Conv2d(16, 32, 5, 1, 2) + ReLU + MaxPool2d(2)
    p2, (_, H2, W2) = im2col_pool_window(x1)                      # [B*49, 576]
    y2 = conv_relu_pool(p2, conv_w_to_fused_mat(params["conv2_w"]),
                        params["conv2_b"], cout=32)

    # PyTorch x.view(B, -1) flattens NCHW; keep activations in NHWC row order and
    # permute the FC weight rows instead (removes the activation transpose).
    feat = y2.reshape(B, H2 * W2 * 32)
    wfc = fc_weight_nhwc(params["fc_w"], H2, W2, 32)
    return linear_softmax(feat, wfc, params["fc_b"])


# ----------------------------------------------------------------------------
# Pure-JAX reference (sanity check only)
# ----------------------------------------------------------------------------
def cnn_reference(x_nchw, params):
    x = jnp.transpose(x_nchw, (0, 2, 3, 1)).astype(jnp.float32)

    def conv_block(x, w_oihw, b):
        w_hwio = jnp.transpose(w_oihw, (2, 3, 1, 0))
        y = jax.lax.conv_general_dilated(
            x, w_hwio, window_strides=(1, 1), padding="SAME",
            dimension_numbers=("NHWC", "HWIO", "NHWC"))
        y = jax.nn.relu(y + b)
        return jax.lax.reduce_window(y, -jnp.inf, jax.lax.max,
                                     (1, 2, 2, 1), (1, 2, 2, 1), "VALID")

    x = conv_block(x, params["conv1_w"], params["conv1_b"])
    x = conv_block(x, params["conv2_w"], params["conv2_b"])
    B = x.shape[0]
    feat = jnp.transpose(x, (0, 3, 1, 2)).reshape(B, -1)
    logits = feat @ params["fc_w"].T + params["fc_b"]
    return jax.nn.softmax(logits, axis=1)


# ----------------------------------------------------------------------------
# Deterministic parameter init + driver
# ----------------------------------------------------------------------------
def init_params(key):
    k1, k2, k3, k4, k5, k6 = jax.random.split(key, 6)
    return {
        "conv1_w": 0.10 * jax.random.normal(k1, (16, 1, 5, 5), jnp.float32),
        "conv1_b": 0.01 * jax.random.normal(k2, (16,), jnp.float32),
        "conv2_w": 0.05 * jax.random.normal(k3, (32, 16, 5, 5), jnp.float32),
        "conv2_b": 0.01 * jax.random.normal(k4, (32,), jnp.float32),
        "fc_w": 0.02 * jax.random.normal(k5, (10, 32 * 7 * 7), jnp.float32),
        "fc_b": 0.01 * jax.random.normal(k6, (10,), jnp.float32),
    }


if __name__ == "__main__":
    root = jax.random.PRNGKey(0)
    kx, kp = jax.random.split(root)
    # 28x28 single-channel input is implied by Linear(32*7*7, 10) after two 2x pools.
    x = jax.random.normal(kx, (2, 1, 28, 28), jnp.float32)
    params = init_params(kp)

    out = jax.block_until_ready(cnn_forward(x, params))

    assert out.shape == (2, 10) and out.dtype == jnp.float32
    # softmax rows sum to ~1 (exact reciprocal, f32 softmax)
    assert jnp.allclose(jnp.sum(out, axis=1), 1.0, atol=1e-3)
    # sanity-check against pure-JAX f32 reference (bf16 operands -> 2e-2 tolerance)
    ref = jax.block_until_ready(cnn_reference(x, params))
    assert jnp.allclose(out, ref, atol=2e-2), (out, ref)

    print("KERNEL_OK")
</pallas_src>

<mosaic_0001>
module attributes {stable_mosaic.version = 11 : i64} {
  func.func @_conv_relu_pool_kernel(%arg0: i32, %arg1: memref<200x36xbf16, #tpu.memory_space<vmem>>, %arg2: memref<36x128xbf16, #tpu.memory_space<vmem>>, %arg3: memref<1x128xf32, #tpu.memory_space<vmem>>, %arg4: memref<200x128xbf16, #tpu.memory_space<vmem>>) attributes {dimension_semantics = [#tpu.dimension_semantics<parallel>], iteration_bounds = array<i64: 2>, scalar_prefetch = 0 : i64, scratch_operands = 0 : i64, tpu.core_type = #tpu.core_type<tc>, window_params = [{transform_indices = @transform_0, window_bounds = array<i64: 200, 36>}, {pipeline_mode = #tpu.pipeline_mode<synchronous>, transform_indices = @transform_1, window_bounds = array<i64: 36, 128>}, {pipeline_mode = #tpu.pipeline_mode<synchronous>, transform_indices = @transform_2, window_bounds = array<i64: 1, 128>}, {transform_indices = @transform_3, window_bounds = array<i64: 200, 128>}]} {
    %c0 = arith.constant 0 : index
    %c0_0 = arith.constant 0 : index
    %0 = vector.load %arg1[%c0, %c0_0] : memref<200x36xbf16, #tpu.memory_space<vmem>>, vector<200x36xbf16>
    %c0_1 = arith.constant 0 : index
    %c0_2 = arith.constant 0 : index
    %1 = vector.load %arg2[%c0_1, %c0_2] : memref<36x128xbf16, #tpu.memory_space<vmem>>, vector<36x128xbf16>
    %cst = arith.constant dense<0.000000e+00> : vector<200x128xf32>
    %2 = tpu.matmul %0, %1, %cst {dimension_numbers = #tpu.dot_dimension_numbers<[1], [0], [0], [1], [0, 0, 1, 1], [], []>} : vector<200x36xbf16>, vector<36x128xbf16>, vector<200x128xf32> -> vector<200x128xf32>
    %c64_i32 = arith.constant 64 : i32
    %3 = tpu.dynamic_rotate %2 by %c64_i32 dim 1 : vector<200x128xf32>, i32 -> vector<200x128xf32>
    %4 = arith.maximumf %2, %3 : vector<200x128xf32>
    %c32_i32 = arith.constant 32 : i32
    %5 = tpu.dynamic_rotate %4 by %c32_i32 dim 1 : vector<200x128xf32>, i32 -> vector<200x128xf32>
    %6 = arith.maximumf %4, %5 : vector<200x128xf32>
    %c0_3 = arith.constant 0 : index
    %c0_4 = arith.constant 0 : index
    %7 = vector.load %arg3[%c0_3, %c0_4] : memref<1x128xf32, #tpu.memory_space<vmem>>, vector<1x128xf32>
    %8 = vector.broadcast %7 : vector<1x128xf32> to vector<200x128xf32>
    %9 = arith.addf %6, %8 : vector<200x128xf32>
    %cst_5 = arith.constant 0.000000e+00 : f32
    %10 = vector.broadcast %cst_5 : f32 to vector<200x128xf32>
    %11 = arith.maximumf %9, %10 : vector<200x128xf32>
    %12 = arith.truncf %11 : vector<200x128xf32> to vector<200x128xbf16>
    %c0_6 = arith.constant 0 : index
    %c0_7 = arith.constant 0 : index
    %13 = vector.load %arg4[%c0_6, %c0_7] : memref<200x128xbf16, #tpu.memory_space<vmem>>, vector<200x128xbf16>
    tpu.vector_store %arg4[%c0_6, %c0_7], %12 {strides = array<i32>} : memref<200x128xbf16, #tpu.memory_space<vmem>>, vector<200x128xbf16>,
    return
  }
  func.func @transform_0(%arg0: i32) -> (i32, i32) {
    %c0_i32 = arith.constant 0 : i32
    %c0_i32_0 = arith.constant 0 : i32
    return %arg0, %c0_i32 : i32, i32
  }
  func.func @transform_1(%arg0: i32) -> (i32, i32) {
    %c0_i32 = arith.constant 0 : i32
    %c0_i32_0 = arith.constant 0 : i32
    %c0_i32_1 = arith.constant 0 : i32
    return %c0_i32, %c0_i32_0 : i32, i32
  }
  func.func @transform_2(%arg0: i32) -> (i32, i32) {
    %c0_i32 = arith.constant 0 : i32
    %c0_i32_0 = arith.constant 0 : i32
    %c0_i32_1 = arith.constant 0 : i32
    return %c0_i32, %c0_i32_0 : i32, i32
  }
  func.func @transform_3(%arg0: i32) -> (i32, i32) {
    %c0_i32 = arith.constant 0 : i32
    %c0_i32_0 = arith.constant 0 : i32
    return %arg0, %c0_i32 : i32, i32
  }
}

module attributes {stable_mosaic.version = 11 : i64} {
  func.func @_conv_relu_pool_kernel(%arg0: i32, %arg1: memref<56x576xbf16, #tpu.memory_space<vmem>>, %arg2: memref<576x128xbf16, #tpu.memory_space<vmem>>, %arg3: memref<1x128xf32, #tpu.memory_space<vmem>>, %arg4: memref<56x128xbf16, #tpu.memory_space<vmem>>) attributes {dimension_semantics = [#tpu.dimension_semantics<parallel>], iteration_bounds = array<i64: 2>, scalar_prefetch = 0 : i64, scratch_operands = 0 : i64, tpu.core_type = #tpu.core_type<tc>, window_params = [{transform_indices = @transform_0, window_bounds = array<i64: 56, 576>}, {pipeline_mode = #tpu.pipeline_mode<synchronous>, transform_indices = @transform_1, window_bounds = array<i64: 576, 128>}, {pipeline_mode = #tpu.pipeline_mode<synchronous>, transform_indices = @transform_2, window_bounds = array<i64: 1, 128>}, {transform_indices = @transform_3, window_bounds = array<i64: 56, 128>}]} {
    %c0 = arith.constant 0 : index
    %c0_0 = arith.constant 0 : index
    %0 = vector.load %arg1[%c0, %c0_0] : memref<56x576xbf16, #tpu.memory_space<vmem>>, vector<56x576xbf16>
    %c0_1 = arith.constant 0 : index
    %c0_2 = arith.constant 0 : index
    %1 = vector.load %arg2[%c0_1, %c0_2] : memref<576x128xbf16, #tpu.memory_space<vmem>>, vector<576x128xbf16>
    %cst = arith.constant dense<0.000000e+00> : vector<56x128xf32>
    %2 = tpu.matmul %0, %1, %cst {dimension_numbers = #tpu.dot_dimension_numbers<[1], [0], [0], [1], [0, 0, 1, 1], [], []>} : vector<56x576xbf16>, vector<576x128xbf16>, vector<56x128xf32> -> vector<56x128xf32>
    %c64_i32 = arith.constant 64 : i32
    %3 = tpu.dynamic_rotate %2 by %c64_i32 dim 1 : vector<56x128xf32>, i32 -> vector<56x128xf32>
    %4 = arith.maximumf %2, %3 : vector<56x128xf32>
    %c32_i32 = arith.constant 32 : i32
    %5 = tpu.dynamic_rotate %4 by %c32_i32 dim 1 : vector<56x128xf32>, i32 -> vector<56x128xf32>
    %6 = arith.maximumf %4, %5 : vector<56x128xf32>
    %c0_3 = arith.constant 0 : index
    %c0_4 = arith.constant 0 : index
    %7 = vector.load %arg3[%c0_3, %c0_4] : memref<1x128xf32, #tpu.memory_space<vmem>>, vector<1x128xf32>
    %8 = vector.broadcast %7 : vector<1x128xf32> to vector<56x128xf32>
    %9 = arith.addf %6, %8 : vector<56x128xf32>
    %cst_5 = arith.constant 0.000000e+00 : f32
    %10 = vector.broadcast %cst_5 : f32 to vector<56x128xf32>
    %11 = arith.maximumf %9, %10 : vector<56x128xf32>
    %12 = arith.truncf %11 : vector<56x128xf32> to vector<56x128xbf16>
    %c0_6 = arith.constant 0 : index
    %c0_7 = arith.constant 0 : index
    %13 = vector.load %arg4[%c0_6, %c0_7] : memref<56x128xbf16, #tpu.memory_space<vmem>>, vector<56x128xbf16>
    tpu.vector_store %arg4[%c0_6, %c0_7], %12 {strides = array<i32>} : memref<56x128xbf16, #tpu.memory_space<vmem>>, vector<56x128xbf16>,
    return
  }
  func.func @transform_0(%arg0: i32) -> (i32, i32) {
    %c0_i32 = arith.constant 0 : i32
    %c0_i32_0 = arith.constant 0 : i32
    return %arg0, %c0_i32 : i32, i32
  }
  func.func @transform_1(%arg0: i32) -> (i32, i32) {
    %c0_i32 = arith.constant 0 : i32
    %c0_i32_0 = arith.constant 0 : i32
    %c0_i32_1 = arith.constant 0 : i32
    return %c0_i32, %c0_i32_0 : i32, i32
  }
  func.func @transform_2(%arg0: i32) -> (i32, i32) {
    %c0_i32 = arith.constant 0 : i32
    %c0_i32_0 = arith.constant 0 : i32
    %c0_i32_1 = arith.constant 0 : i32
    return %c0_i32, %c0_i32_0 : i32, i32
  }
  func.func @transform_3(%arg0: i32) -> (i32, i32) {
    %c0_i32 = arith.constant 0 : i32
    %c0_i32_0 = arith.constant 0 : i32
    return %arg0, %c0_i32 : i32, i32
  }
}

module attributes {stable_mosaic.version = 11 : i64} {
  func.func @_linear_softmax_kernel(%arg0: i32, %arg1: memref<8x1568xbf16, #tpu.memory_space<vmem>>, %arg2: memref<1568x128xbf16, #tpu.memory_space<vmem>>, %arg3: memref<1x128xf32, #tpu.memory_space<vmem>>, %arg4: memref<8x128xf32, #tpu.memory_space<vmem>>) attributes {dimension_semantics = [#tpu.dimension_semantics<parallel>], iteration_bounds = array<i64: 1>, scalar_prefetch = 0 : i64, scratch_operands = 0 : i64, tpu.core_type = #tpu.core_type<tc>, window_params = [{transform_indices = @transform_0, window_bounds = array<i64: 8, 1568>}, {pipeline_mode = #tpu.pipeline_mode<synchronous>, transform_indices = @transform_1, window_bounds = array<i64: 1568, 128>}, {pipeline_mode = #tpu.pipeline_mode<synchronous>, transform_indices = @transform_2, window_bounds = array<i64: 1, 128>}, {transform_indices = @transform_3, window_bounds = array<i64: 8, 128>}]} {
    %c0 = arith.constant 0 : index
    %c0_0 = arith.constant 0 : index
    %0 = vector.load %arg1[%c0, %c0_0] : memref<8x1568xbf16, #tpu.memory_space<vmem>>, vector<8x1568xbf16>
    %c0_1 = arith.constant 0 : index
    %c0_2 = arith.constant 0 : index
    %1 = vector.load %arg2[%c0_1, %c0_2] : memref<1568x128xbf16, #tpu.memory_space<vmem>>, vector<1568x128xbf16>
    %cst = arith.constant dense<0.000000e+00> : vector<8x128xf32>
    %2 = tpu.matmul %0, %1, %cst {dimension_numbers = #tpu.dot_dimension_numbers<[1], [0], [0], [1], [0, 0, 1, 1], [], []>} : vector<8x1568xbf16>, vector<1568x128xbf16>, vector<8x128xf32> -> vector<8x128xf32>
    %c0_3 = arith.constant 0 : index
    %c0_4 = arith.constant 0 : index
    %3 = vector.load %arg3[%c0_3, %c0_4] : memref<1x128xf32, #tpu.memory_space<vmem>>, vector<1x128xf32>
    %4 = vector.broadcast %3 : vector<1x128xf32> to vector<8x128xf32>
    %5 = arith.addf %2, %4 : vector<8x128xf32>
    %cst_5 = arith.constant dense<0xFF800000> : vector<8xf32>
    %6 = vector.multi_reduction <maximumf>, %5, %cst_5 [1] : vector<8x128xf32> to vector<8xf32>
    %7 = vector.shape_cast %6 : vector<8xf32> to vector<8x1xf32>
    %8 = vector.broadcast %7 : vector<8x1xf32> to vector<8x128xf32>
    %9 = arith.subf %5, %8 : vector<8x128xf32>
    %10 = math.exp %9 : vector<8x128xf32>
    %cst_6 = arith.constant dense<0.000000e+00> : vector<8xf32>
    %11 = vector.multi_reduction <add>, %10, %cst_6 [1] : vector<8x128xf32> to vector<8xf32>
    %12 = vector.shape_cast %11 : vector<8xf32> to vector<8x1xf32>
    %13 = tpu.reciprocal %12 : vector<8x1xf32> -> vector<8x1xf32>
    %14 = vector.broadcast %13 : vector<8x1xf32> to vector<8x128xf32>
    %15 = arith.mulf %10, %14 : vector<8x128xf32>
    %c0_7 = arith.constant 0 : index
    %c0_8 = arith.constant 0 : index
    %16 = vector.load %arg4[%c0_7, %c0_8] : memref<8x128xf32, #tpu.memory_space<vmem>>, vector<8x128xf32>
    tpu.vector_store %arg4[%c0_7, %c0_8], %15 {strides = array<i32>} : memref<8x128xf32, #tpu.memory_space<vmem>>, vector<8x128xf32>,
    return
  }
  func.func @transform_0(%arg0: i32) -> (i32, i32) {
    %c0_i32 = arith.constant 0 : i32
    %c0_i32_0 = arith.constant 0 : i32
    return %arg0, %c0_i32 : i32, i32
  }
  func.func @transform_1(%arg0: i32) -> (i32, i32) {
    %c0_i32 = arith.constant 0 : i32
    %c0_i32_0 = arith.constant 0 : i32
    %c0_i32_1 = arith.constant 0 : i32
    return %c0_i32, %c0_i32_0 : i32, i32
  }
  func.func @transform_2(%arg0: i32) -> (i32, i32) {
    %c0_i32 = arith.constant 0 : i32
    %c0_i32_0 = arith.constant 0 : i32
    %c0_i32_1 = arith.constant 0 : i32
    return %c0_i32, %c0_i32_0 : i32, i32
  }
  func.func @transform_3(%arg0: i32) -> (i32, i32) {
    %c0_i32 = arith.constant 0 : i32
    %c0_i32_0 = arith.constant 0 : i32
    return %arg0, %c0_i32 : i32, i32
  }
}

</mosaic_0001>

<llo_original>
// kernel: cnn_forward.3
$region0: #{cnn_forward.3}
  #allocation0 [shape = 'u32[]', space=smem, size = 0x4, offset = 0x4, fixed_abs, tag = 'smem constant byte address 0x4 - core index']
  #allocation1 [shape = 'u32[144,128]{1,0:T(1,128)}', space=vmem, size = 0x12000, scoped, tag = 'internal scratch']
  %s0 = inlined_call_operand.vmem [shape: bf16[400,36], index: 0, kind: input, shape index: {}]
  %s1 = inlined_call_operand.vmem [shape: bf16[36,128], index: 1, kind: input, shape index: {}]
  %s2 = inlined_call_operand.vmem [shape: f32[1,128], index: 2, kind: input, shape index: {}]
  %s3 = inlined_call_operand.vmem [shape: bf16[400,128], index: 3, kind: output, shape index: {}]
  %s4 = sld [smem:[#allocation0]]
  $region45: #{cnn_forward.3} parent=0
    _
  %s6 = ssub.s32 1, %s4
  %s7 = scalar_select 0, %s6, %s4
  loop: start=0, step=1, limit=4
  $region2: #{cnn_forward.3} parent=0 // loop_pre_header
    _
  $region3: #{cnn_forward.3} parent=0 // loop_header
    %s9 = sphi 0, %s13
    %p10 = scmp.ge.s32.totalorder %s9, 4
    %s19 = sphi 0, %s21
    %s22 = sphi 0, %s19
    %s23 = sphi 0, %s22
    %s39 = sphi 0, %s23
    %s43 = sphi 0, %s43
    %s45 = sphi 0, %s43
    %s46 = sphi 0, %s45
    %s60 = sphi 0, %s46
    %s64 = sphi 0, %s64
    %s66 = sphi 0, %s64
    %s67 = sphi 0, %s66
    %s81 = sphi 0, %s67
    %s87 = sphi 0, %s89
    %s90 = sphi 0, %s87
    %s91 = sphi 0, %s90
    %s107 = sphi 0, %s91
  $region4: #{cnn_forward.3} parent=0 // loop_header_branch
    %12 = sbr.rel (%p10) target = $region8
  $region5: #{cnn_forward.3} parent=0 // loop_body
    %s14 = ssub.s32 %s9, 1
    %s15 = ssub.s32 %s9, 2
    %s16 = sadd.s32 %s9, 1
    %s17 = ssub.s32 %s9, %s16
    %p18 = scmp.eq.s32.totalorder %s17, 0
    %s20 = sadd.s32 %s19, 1
    %s21 = scalar_select %p18, %s19, %s20
    %p24 = pneg %p18
    %p25 = scmp.eq.s32.totalorder %s9, 1
    %p26 = por %p24, %p25
    %p27 = scmp.ne.s32.totalorder %s19, %s22
    %p28 = scmp.eq.s32.totalorder %s9, 0
    %p29 = por %p27, %p28
    %p30 = scmp.ne.s32.totalorder %s19, %s22
    %p31 = scmp.eq.s32.totalorder %s14, 1
    %p32 = por %p30, %p31
    %p33 = scmp.ne.s32.totalorder %s22, %s23
    %p34 = scmp.eq.s32.totalorder %s14, 0
    %p35 = por %p33, %p34
    %p36 = scmp.ne.s32.totalorder %s22, %s23
    %p37 = scmp.eq.s32.totalorder %s15, 1
    %p38 = por %p36, %p37
    %p40 = scmp.ne.s32.totalorder %s23, %s39
    %p41 = scmp.eq.s32.totalorder %s15, 0
    %p42 = por %p40, %p41
    %s44 = sadd.s32 %s43, 1
    %p47 = scmp.eq.s32.totalorder %s9, 1
    %p48 = scmp.ne.s32.totalorder %s43, %s45
    %p49 = scmp.eq.s32.totalorder %s9, 0
    %p50 = por %p48, %p49
    %p51 = scmp.ne.s32.totalorder %s43, %s45
    %p52 = scmp.eq.s32.totalorder %s14, 1
    %p53 = por %p51, %p52
    %p54 = scmp.ne.s32.totalorder %s45, %s46
    %p55 = scmp.eq.s32.totalorder %s14, 0
    %p56 = por %p54, %p55
    %p57 = scmp.ne.s32.totalorder %s45, %s46
    %p58 = scmp.eq.s32.totalorder %s15, 1
    %p59 = por %p57, %p58
    %p61 = scmp.ne.s32.totalorder %s46, %s60
    %p62 = scmp.eq.s32.totalorder %s15, 0
    %p63 = por %p61, %p62
    %s65 = sadd.s32 %s64, 1
    %p68 = scmp.eq.s32.totalorder %s9, 1
    %p69 = scmp.ne.s32.totalorder %s64, %s66
    %p70 = scmp.eq.s32.totalorder %s9, 0
    %p71 = por %p69, %p70
    %p72 = scmp.ne.s32.totalorder %s64, %s66
    %p73 = scmp.eq.s32.totalorder %s14, 1
    %p74 = por %p72, %p73
    %p75 = scmp.ne.s32.totalorder %s66, %s67
    %p76 = scmp.eq.s32.totalorder %s14, 0
    %p77 = por %p75, %p76
    %p78 = scmp.ne.s32.totalorder %s66, %s67
    %p79 = scmp.eq.s32.totalorder %s15, 1
    %p80 = por %p78, %p79
    %p82 = scmp.ne.s32.totalorder %s67, %s81
    %p83 = scmp.eq.s32.totalorder %s15, 0
    %p84 = por %p82, %p83
    %s85 = ssub.s32 %s9, %s16
    %p86 = scmp.eq.s32.totalorder %s85, 0
    %s88 = sadd.s32 %s87, 1
    %s89 = scalar_select %p86, %s87, %s88
    %p92 = pneg %p86
    %p93 = scmp.eq.s32.totalorder %s9, 1
    %p94 = por %p92, %p93
    %p95 = scmp.ne.s32.totalorder %s87, %s90
    %p96 = scmp.eq.s32.totalorder %s9, 0
    %p97 = por %p95, %p96
    %p98 = scmp.ne.s32.totalorder %s87, %s90
    %p99 = scmp.eq.s32.totalorder %s14, 1
    %p100 = por %p98, %p99
    %p101 = scmp.ne.s32.totalorder %s90, %s91
    %p102 = scmp.eq.s32.totalorder %s14, 0
    %p103 = por %p101, %p102
    %p104 = scmp.ne.s32.totalorder %s90, %s91
    %p105 = scmp.eq.s32.totalorder %s15, 1
    %p106 = por %p104, %p105
    %p108 = scmp.ne.s32.totalorder %s91, %s107
    %p109 = scmp.eq.s32.totalorder %s15, 0
    %p110 = por %p108, %p109
    %p111 = scmp.le.s32.totalorder 1, %s9
    %p112 = scmp.lt.s32.totalorder %s9, 3
    %p113 = pnand %p111, %p112
    %p114 = pneg %p113
    // Predicated region
    $region9: #{cnn_forward.3} parent=5 // pred_check
      _
    $region10: #{cnn_forward.3} parent=5 // pred_check_branch
      %116 = sbr.rel (%p113) target = $region12
    $region11: #{cnn_forward.3} parent=5 // pred_region
      %s117 = ssub.s32 %s9, 1
      // Predicated region
      $region13: #{cnn_forward.3} parent=11 // pred_check
        %p118 = pneg %p56
      $region14: #{cnn_forward.3} parent=11 // pred_check_branch
        %120 = sbr.rel (%p118) target = $region16
      $region15: #{cnn_forward.3} parent=11 // pred_region
        _
      $region16: #{cnn_forward.3} parent=11 // pred_fallthru
        _
      // Predicated region
      $region17: #{cnn_forward.3} parent=11 // pred_check
        %p121 = pneg %p77
      $region18: #{cnn_forward.3} parent=11 // pred_check_branch
        %123 = sbr.rel (%p121) target = $region20
      $region19: #{cnn_forward.3} parent=11 // pred_region
        _
      $region20: #{cnn_forward.3} parent=11 // pred_fallthru
        _
    $region12: #{cnn_forward.3} parent=5 // pred_fallthru
      _
    %p124 = scmp.lt.s32.totalorder %s9, 2
    // Predicated region
    $region21: #{cnn_forward.3} parent=5 // pred_check
      %p125 = pneg %p124
    $region22: #{cnn_forward.3} parent=5 // pred_check_branch
      %127 = sbr.rel (%p125) target = $region24
    $region23: #{cnn_forward.3} parent=5 // pred_region
      // Predicated region
      $region25: #{cnn_forward.3} parent=23 // pred_check
        %p128 = pneg %p29
      $region26: #{cnn_forward.3} parent=23 // pred_check_branch
        %130 = sbr.rel (%p128) target = $region28
      $region27: #{cnn_forward.3} parent=23 // pred_region
        %s131 = smul.u32 25, %s9
        %p132 = scmp.lt.s32.totalorder %s131, 49
        %s133 = scalar_select %p132, %s131, 49
        %s134 = smul.addr %s133, 4
        %s135 = scalar_lea.vmem %s0, %s134
        %s136 = smul.u32 25, %s9
      $region28: #{cnn_forward.3} parent=23 // pred_fallthru
        _
    $region24: #{cnn_forward.3} parent=5 // pred_fallthru
      _
    %p137 = scmp.le.s32.totalorder 1, %s9
    %p138 = scmp.lt.s32.totalorder %s9, 3
    %p139 = pnand %p137, %p138
    %p140 = pneg %p139
    // Predicated region
    $region29: #{cnn_forward.3} parent=5 // pred_check
      _
    $region30: #{cnn_forward.3} parent=5 // pred_check_branch
      %142 = sbr.rel (%p139) target = $region32
    $region31: #{cnn_forward.3} parent=5 // pred_region
      %s143 = ssub.s32 %s9, 1
      %s144 = smul.u32 25, %s14
      %p145 = scmp.lt.s32.totalorder %s144, 49
      %s146 = scalar_select %p145, %s144, 49
      %s147 = smul.addr %s146, 4
      %s148 = scalar_lea.vmem %s0, %s147
      %p149 = pneg %p35
      %p150 = pneg %p32
      %p151 = pneg %p56
      %p152 = pneg %p53
      %p153 = pneg %p77
      %p154 = pneg %p74
      %p155 = pneg %p103
      %p156 = pneg %p100
      %s157 = smul.u32 25, %s14
      %p158 = scmp.lt.s32.totalorder %s157, 49
      %s159 = scalar_select %p158, %s157, 49
      %s160 = smul.addr %s159, 4
      %s161 = scalar_lea.vmem %s3, %s160
      %s162 = smul.u32 25, %s14
      %p163 = scmp.lt.s32.totalorder %s162, 49
      %s164 = scalar_select %p163, %s162, 49
      %s165 = smul.addr %s164, 4
      %s166 = scalar_lea.vmem %s0, %s165
      %s167 = smul.u32 25, %s14
      %s168 = smul.u32 25, %s14
      %p169 = scmp.lt.s32.totalorder %s168, 49
      %s170 = scalar_select %p169, %s168, 49
      %s171 = smul.addr %s170, 4
      %s172 = scalar_lea.vmem %s3, %s171
      %s173 = smul.u32 25, %s14
      %v175 = vld [vmem:[%s166] sm:$0xf]
      %v176 = vld [vmem:[%s166 + $0x4] sm:$0xf]
      %v177 = vld [vmem:[%s166 + $0x8] sm:$0xf]
      %v178 = vld [vmem:[%s166 + $0xc] sm:$0xf]
      %v179 = vld [vmem:[%s166 + $0x10] sm:$0xf]
      %v180 = vld [vmem:[%s166 + $0x14] sm:$0xf]
      %v181 = vld [vmem:[%s166 + $0x18] sm:$0xf]
      %v182 = vld [vmem:[%s166 + $0x1c] sm:$0xf]
      %v183 = vld [vmem:[%s166 + $0x20] sm:$0xf]
      %v184 = vld [vmem:[%s166 + $0x24] sm:$0xf]
      %v185 = vld [vmem:[%s166 + $0x28] sm:$0xf]
      %v186 = vld [vmem:[%s166 + $0x2c] sm:$0xf]
      %v187 = vld [vmem:[%s166 + $0x30] sm:$0xf]
      %v188 = vld [vmem:[%s166 + $0x34] sm:$0xf]
      %v189 = vld [vmem:[%s166 + $0x38] sm:$0xf]
      %v190 = vld [vmem:[%s166 + $0x3c] sm:$0xf]
      %v191 = vld [vmem:[%s166 + $0x40] sm:$0xf]
      %v192 = vld [vmem:[%s166 + $0x44] sm:$0xf]
      %v193 = vld [vmem:[%s166 + $0x48] sm:$0xf]
      %v194 = vld [vmem:[%s166 + $0x4c] sm:$0xf]
      %v195 = vld [vmem:[%s166 + $0x50] sm:$0xf]
      %v196 = vld [vmem:[%s166 + $0x54] sm:$0xf]
      %v197 = vld [vmem:[%s166 + $0x58] sm:$0xf]
      %v198 = vld [vmem:[%s166 + $0x5c] sm:$0xf]
      %v199 = vld [vmem:[%s166 + $0x60] sm:$0xf]
      %v200 = vld [vmem:[%s1] sm:$0xf]
      %v201 = vld [vmem:[%s1 + $0x4] sm:$0xf]
      %v202 = vld [vmem:[%s1 + $0x8] sm:$0xf]
      %v203 = vld [vmem:[%s1 + $0xc] sm:$0xf]
      %v204 = vld [vmem:[%s1 + $0x10] sm:$0x3]
      %v230 = vunpack.c.l.b16 %v175
      %v231 = vunpack.c.l.b16 %v176
      %v232 = vunpack.c.l.b16 %v177
      %v233 = vunpack.c.l.b16 %v178
      %v234 = vunpack.c.l.b16 %v179
      %v235 = vunpack.c.l.b16 %v180
      %v236 = vunpack.c.l.b16 %v181
      %v237 = vunpack.c.l.b16 %v182
      %v238 = vunpack.c.l.b16 %v183
      %v239 = vunpack.c.l.b16 %v184
      %v240 = vunpack.c.l.b16 %v185
      %v241 = vunpack.c.l.b16 %v186
      %v242 = vunpack.c.l.b16 %v187
      %v243 = vunpack.c.l.b16 %v188
      %v244 = vunpack.c.l.b16 %v189
      %v245 = vunpack.c.l.b16 %v190
      %v246 = vunpack.c.l.b16 %v191
      %v247 = vunpack.c.l.b16 %v192
      %v248 = vunpack.c.l.b16 %v193
      %v249 = vunpack.c.l.b16 %v194
      %v250 = vunpack.c.l.b16 %v195
      %v251 = vunpack.c.l.b16 %v196
      %v252 = vunpack.c.l.b16 %v197
      %v253 = vunpack.c.l.b16 %v198
      %v254 = vunpack.c.l.b16 %v199
      %v255 = vpack.c.b16 %v231, %v230
      %v256 = vpack.c.b16 %v233, %v232
      %v257 = vpack.c.b16 %v235, %v234
      %v258 = vpack.c.b16 %v237, %v236
      %v259 = vpack.c.b16 %v239, %v238
      %v260 = vpack.c.b16 %v241, %v240
      %v261 = vpack.c.b16 %v243, %v242
      %v262 = vpack.c.b16 %v245, %v244
      %v263 = vpack.c.b16 %v247, %v246
      %v264 = vpack.c.b16 %v249, %v248
      %v265 = vpack.c.b16 %v251, %v250
      %v266 = vpack.c.b16 %v253, %v252
      %v267 = vpack.c.b16 %v254, %v254
      %v273 = vunpack.c.l.b16 %v200
      %v274 = vunpack.c.l.b16 %v201
      %v275 = vunpack.c.l.b16 %v202
      %v276 = vunpack.c.l.b16 %v203
      %v277 = vunpack.c.l.b16 %v204
      %v278 = vpack.c.b16 %v274, %v273
      %v279 = vpack.c.b16 %v276, %v275
      %v280 = vpack.c.b16 %v277, %v277
      %vm283 = vcmask 293888
      %v285 = vsel %vm283, %v255, 0
      %v288 = vsel %vm283, %v256, 0
      %v291 = vsel %vm283, %v257, 0
      %v294 = vsel %vm283, %v258, 0
      %v297 = vsel %vm283, %v259, 0
      %v300 = vsel %vm283, %v260, 0
      %v303 = vsel %vm283, %v261, 0
      %v306 = vsel %vm283, %v262, 0
      %v309 = vsel %vm283, %v263, 0
      %v312 = vsel %vm283, %v264, 0
      %v315 = vsel %vm283, %v265, 0
      %v318 = vsel %vm283, %v266, 0
      %v321 = vsel %vm283, %v267, 0
      %vm323 = vcmask 1041408
      %v325 = vsel %vm323, %v280, 0
      %327 = vmatprep.subr.bf16.mxu0 0
      %328 = vmatpush1.bf16.msra.mxu0 %v278
      %329 = vmatprep.subr.bf16.mxu0 0
      %330 = vmatpush1.bf16.msra.mxu0 %v279
      %331 = vmatprep.subr.bf16.mxu0 0
      %332 = vmatpush1.bf16.msra.mxu0 %v325
      %333 = vmatprep.subr.bf16.mxu0 0
      %334 = vmatpush1.bf16.msra.mxu0 0
      %335 = vmatprep.subr.bf16.mxu0 0
      %336 = vmatpush1.bf16.msra.mxu0 0
      %337 = vmatprep.subr.bf16.mxu0 0
      %338 = vmatpush1.bf16.msra.mxu0 0
      %339 = vmatprep.subr.bf16.mxu0 0
      %340 = vmatpush1.bf16.msra.mxu0 0
      %341 = vmatprep.subr.bf16.mxu0 0
      %342 = vmatpush1.bf16.msra.mxu0 0
      %343 = vmatprep.subr.bf16.mxu0 0
      %344 = vmatpush1.bf16.msra.mxu0 0
      %345 = vmatprep.subr.bf16.mxu0 0
      %346 = vmatpush1.bf16.msra.mxu0 0
      %347 = vmatprep.subr.bf16.mxu0 0
      %348 = vmatpush1.bf16.msra.mxu0 0
      %349 = vmatprep.subr.bf16.mxu0 0
      %350 = vmatpush1.bf16.msra.mxu0 0
      %351 = vmatprep.subr.bf16.mxu0 0
      %352 = vmatpush1.bf16.msra.mxu0 0
      %353 = vmatprep.subr.bf16.mxu0 0
      %354 = vmatpush1.bf16.msra.mxu0 0
      %355 = vmatprep.subr.bf16.mxu0 0
      %356 = vmatpush1.bf16.msra.mxu0 0
      %357 = vmatprep.subr.bf16.mxu0 0
      %358 = vmatpush1.bf16.msra.mxu0 0
      %359 = vmatprep.mubr.bf16.mxu0 0
      %360 = vmatmul.mubr.bf16.gmra.mrb[0].mxu0 %v285
      %v361 = vpop.f32.mrb[0].mxu0
      %v362 = vadd.f32 0.0, %v361
      %v363 = vpop.f32.mrb[0].mxu0
      %v364 = vpop.f32.mrb[0].mxu0
      %v365 = vadd.f32 0.0, %v364
      %v366 = vpop.f32.mrb[0].mxu0
      %367 = vmatprep.mubr.bf16.mxu0 0
      %368 = vmatmul.mubr.bf16.gmra.mrb[0].mxu0 %v288
      %v369 = vpop.f32.mrb[0].mxu0
      %v370 = vadd.f32 0.0, %v369
      %v371 = vpop.f32.mrb[0].mxu0
      %v372 = vpop.f32.mrb[0].mxu0
      %v373 = vadd.f32 0.0, %v372
      %v374 = vpop.f32.mrb[0].mxu0
      %375 = vmatprep.mubr.bf16.mxu0 0
      %376 = vmatmul.mubr.bf16.gmra.mrb[0].mxu0 %v291
      %v377 = vpop.f32.mrb[0].mxu0
      %v378 = vadd.f32 0.0, %v377
      %v379 = vpop.f32.mrb[0].mxu0
      %v380 = vpop.f32.mrb[0].mxu0
      %v381 = vadd.f32 0.0, %v380
      %v382 = vpop.f32.mrb[0].mxu0
      %383 = vmatprep.mubr.bf16.mxu0 0
      %384 = vmatmul.mubr.bf16.gmra.mrb[0].mxu0 %v294
      %v385 = vpop.f32.mrb[0].mxu0
      %v386 = vadd.f32 0.0, %v385
      %v387 = vpop.f32.mrb[0].mxu0
      %v388 = vpop.f32.mrb[0].mxu0
      %v389 = vadd.f32 0.0, %v388
      %v390 = vpop.f32.mrb[0].mxu0
      %391 = vmatprep.mubr.bf16.mxu0 0
      %392 = vmatmul.mubr.bf16.gmra.mrb[0].mxu0 %v297
      %v393 = vpop.f32.mrb[0].mxu0
      %v394 = vadd.f32 0.0, %v393
      %v395 = vpop.f32.mrb[0].mxu0
      %v396 = vpop.f32.mrb[0].mxu0
      %v397 = vadd.f32 0.0, %v396
      %v398 = vpop.f32.mrb[0].mxu0
      %399 = vmatprep.mubr.bf16.mxu0 0
      %400 = vmatmul.mubr.bf16.gmra.mrb[0].mxu0 %v300
      %v401 = vpop.f32.mrb[0].mxu0
      %v402 = vadd.f32 0.0, %v401
      %v403 = vpop.f32.mrb[0].mxu0
      %v404 = vpop.f32.mrb[0].mxu0
      %v405 = vadd.f32 0.0, %v404
      %v406 = vpop.f32.mrb[0].mxu0
      %407 = vmatprep.mubr.bf16.mxu0 0
      %408 = vmatmul.mubr.bf16.gmra.mrb[0].mxu0 %v303
      %v409 = vpop.f32.mrb[0].mxu0
      %v410 = vadd.f32 0.0, %v409
      %v411 = vpop.f32.mrb[0].mxu0
      %v412 = vpop.f32.mrb[0].mxu0
      %v413 = vadd.f32 0.0, %v412
      %v414 = vpop.f32.mrb[0].mxu0
      %415 = vmatprep.mubr.bf16.mxu0 0
      %416 = vmatmul.mubr.bf16.gmra.mrb[0].mxu0 %v306
      %v417 = vpop.f32.mrb[0].mxu0
      %v418 = vadd.f32 0.0, %v417
      %v419 = vpop.f32.mrb[0].mxu0
      %v420 = vpop.f32.mrb[0].mxu0
      %v421 = vadd.f32 0.0, %v420
      %v422 = vpop.f32.mrb[0].mxu0
      %423 = vmatprep.mubr.bf16.mxu0 0
      %424 = vmatmul.mubr.bf16.gmra.mrb[0].mxu0 %v309
      %v425 = vpop.f32.mrb[0].mxu0
      %v426 = vadd.f32 0.0, %v425
      %v427 = vpop.f32.mrb[0].mxu0
      %v428 = vpop.f32.mrb[0].mxu0
      %v429 = vadd.f32 0.0, %v428
      %v430 = vpop.f32.mrb[0].mxu0
      %431 = vmatprep.mubr.bf16.mxu0 0
      %432 = vmatmul.mubr.bf16.gmra.mrb[0].mxu0 %v312
      %v433 = vpop.f32.mrb[0].mxu0
      %v434 = vadd.f32 0.0, %v433
      %v435 = vpop.f32.mrb[0].mxu0
      %v436 = vpop.f32.mrb[0].mxu0
      %v437 = vadd.f32 0.0, %v436
      %v438 = vpop.f32.mrb[0].mxu0
      %439 = vmatprep.mubr.bf16.mxu0 0
      %440 = vmatmul.mubr.bf16.gmra.mrb[0].mxu0 %v315
      %v441 = vpop.f32.mrb[0].mxu0
      %v442 = vadd.f32 0.0, %v441
      %v443 = vpop.f32.mrb[0].mxu0
      %v444 = vpop.f32.mrb[0].mxu0
      %v445 = vadd.f32 0.0, %v444
      %v446 = vpop.f32.mrb[0].mxu0
      %447 = vmatprep.mubr.bf16.mxu0 0
      %448 = vmatmul.mubr.bf16.gmra.mrb[0].mxu0 %v318
      %v449 = vpop.f32.mrb[0].mxu0
      %v450 = vadd.f32 0.0, %v449
      %v451 = vpop.f32.mrb[0].mxu0
      %v452 = vpop.f32.mrb[0].mxu0
      %v453 = vadd.f32 0.0, %v452
      %v454 = vpop.f32.mrb[0].mxu0
      %455 = vmatprep.mubr.bf16.mxu0 0
      %456 = vmatmul.mubr.bf16.gmra.mrb[0].mxu0 %v321
      %v457 = vpop.f32.mrb[0].mxu0
      %v458 = vadd.f32 0.0, %v457
      %v459 = vpop.f32.mrb[0].mxu0
      %v460 = vpop.f32.mrb[0].mxu0
      %v461 = vpop.f32.mrb[0].mxu0
      %462 = vdwg.mxu0
      %463 = vrot.lane.b32.xlu0 %v362, 64
      %v464 = vpop.permute.xlu0 %463
      %465 = vrot.lane.b32.xlu0 %v365, 64
      %v466 = vpop.permute.xlu0 %465
      %467 = vrot.lane.b32.xlu0 %v370, 64
      %v468 = vpop.permute.xlu0 %467
      %469 = vrot.lane.b32.xlu0 %v373, 64
      %v470 = vpop.permute.xlu0 %469
      %471 = vrot.lane.b32.xlu0 %v378, 64
      %v472 = vpop.permute.xlu0 %471
      %473 = vrot.lane.b32.xlu0 %v381, 64
      %v474 = vpop.permute.xlu0 %473
      %475 = vrot.lane.b32.xlu0 %v386, 64
      %v476 = vpop.permute.xlu0 %475
      %477 = vrot.lane.b32.xlu0 %v389, 64
      %v478 = vpop.permute.xlu0 %477
      %479 = vrot.lane.b32.xlu0 %v394, 64
      %v480 = vpop.permute.xlu0 %479
      %481 = vrot.lane.b32.xlu0 %v397, 64
      %v482 = vpop.permute.xlu0 %481
      %483 = vrot.lane.b32.xlu0 %v402, 64
      %v484 = vpop.permute.xlu0 %483
      %485 = vrot.lane.b32.xlu0 %v405, 64
      %v486 = vpop.permute.xlu0 %485
      %487 = vrot.lane.b32.xlu0 %v410, 64
      %v488 = vpop.permute.xlu0 %487
      %489 = vrot.lane.b32.xlu0 %v413, 64
      %v490 = vpop.permute.xlu0 %489
      %491 = vrot.lane.b32.xlu0 %v418, 64
      %v492 = vpop.permute.xlu0 %491
      %493 = vrot.lane.b32.xlu0 %v421, 64
      %v494 = vpop.permute.xlu0 %493
      %495 = vrot.lane.b32.xlu0 %v426, 64
      %v496 = vpop.permute.xlu0 %495
      %497 = vrot.lane.b32.xlu0 %v429, 64
      %v498 = vpop.permute.xlu0 %497
      %499 = vrot.lane.b32.xlu0 %v434, 64
      %v500 = vpop.permute.xlu0 %499
      %501 = vrot.lane.b32.xlu0 %v437, 64
      %v502 = vpop.permute.xlu0 %501
      %503 = vrot.lane.b32.xlu0 %v442, 64
      %v504 = vpop.permute.xlu0 %503
      %505 = vrot.lane.b32.xlu0 %v445, 64
      %v506 = vpop.permute.xlu0 %505
      %507 = vrot.lane.b32.xlu0 %v450, 64
      %v508 = vpop.permute.xlu0 %507
      %509 = vrot.lane.b32.xlu0 %v453, 64
      %v510 = vpop.permute.xlu0 %509
      %511 = vrot.lane.b32.xlu0 %v458, 64
      %v512 = vpop.permute.xlu0 %511
      %v513 = vmax.f32 %v362, %v464
      %v514 = vmax.f32 %v365, %v466
      %v515 = vmax.f32 %v370, %v468
      %v516 = vmax.f32 %v373, %v470
      %v517 = vmax.f32 %v378, %v472
      %v518 = vmax.f32 %v381, %v474
      %v519 = vmax.f32 %v386, %v476
      %v520 = vmax.f32 %v389, %v478
      %v521 = vmax.f32 %v394, %v480
      %v522 = vmax.f32 %v397, %v482
      %v523 = vmax.f32 %v402, %v484
      %v524 = vmax.f32 %v405, %v486
      %v525 = vmax.f32 %v410, %v488
      %v526 = vmax.f32 %v413, %v490
      %v527 = vmax.f32 %v418, %v492
      %v528 = vmax.f32 %v421, %v494
      %v529 = vmax.f32 %v426, %v496
      %v530 = vmax.f32 %v429, %v498
      %v531 = vmax.f32 %v434, %v500
      %v532 = vmax.f32 %v437, %v502
      %v533 = vmax.f32 %v442, %v504
      %v534 = vmax.f32 %v445, %v506
      %v535 = vmax.f32 %v450, %v508
      %v536 = vmax.f32 %v453, %v510
      %v537 = vmax.f32 %v458, %v512
      %538 = vrot.lane.b32.xlu0 %v513, 32
      %v539 = vpop.permute.xlu0 %538
      %540 = vrot.lane.b32.xlu0 %v514, 32
      %v541 = vpop.permute.xlu0 %540
      %542 = vrot.lane.b32.xlu0 %v515, 32
      %v543 = vpop.permute.xlu0 %542
      %544 = vrot.lane.b32.xlu0 %v516, 32
      %v545 = vpop.permute.xlu0 %544
      %546 = vrot.lane.b32.xlu0 %v517, 32
      %v547 = vpop.permute.xlu0 %546
      %548 = vrot.lane.b32.xlu0 %v518, 32
      %v549 = vpop.permute.xlu0 %548
      %550 = vrot.lane.b32.xlu0 %v519, 32
      %v551 = vpop.permute.xlu0 %550
      %552 = vrot.lane.b32.xlu0 %v520, 32
      %v553 = vpop.permute.xlu0 %552
      %554 = vrot.lane.b32.xlu0 %v521, 32
      %v555 = vpop.permute.xlu0 %554
      %556 = vrot.lane.b32.xlu0 %v522, 32
      %v557 = vpop.permute.xlu0 %556
      %558 = vrot.lane.b32.xlu0 %v523, 32
      %v559 = vpop.permute.xlu0 %558
      %560 = vrot.lane.b32.xlu0 %v524, 32
      %v561 = vpop.permute.xlu0 %560
      %562 = vrot.lane.b32.xlu0 %v525, 32
      %v563 = vpop.permute.xlu0 %562
      %564 = vrot.lane.b32.xlu0 %v526, 32
      %v565 = vpop.permute.xlu0 %564
      %566 = vrot.lane.b32.xlu0 %v527, 32
      %v567 = vpop.permute.xlu0 %566
      %568 = vrot.lane.b32.xlu0 %v528, 32
      %v569 = vpop.permute.xlu0 %568
      %570 = vrot.lane.b32.xlu0 %v529, 32
      %v571 = vpop.permute.xlu0 %570
      %572 = vrot.lane.b32.xlu0 %v530, 32
      %v573 = vpop.permute.xlu0 %572
      %574 = vrot.lane.b32.xlu0 %v531, 32
      %v575 = vpop.permute.xlu0 %574
      %576 = vrot.lane.b32.xlu0 %v532, 32
      %v577 = vpop.permute.xlu0 %576
      %578 = vrot.lane.b32.xlu0 %v533, 32
      %v579 = vpop.permute.xlu0 %578
      %580 = vrot.lane.b32.xlu0 %v534, 32
      %v581 = vpop.permute.xlu0 %580
      %582 = vrot.lane.b32.xlu0 %v535, 32
      %v583 = vpop.permute.xlu0 %582
      %584 = vrot.lane.b32.xlu0 %v536, 32
      %v585 = vpop.permute.xlu0 %584
      %586 = vrot.lane.b32.xlu0 %v537, 32
      %v587 = vpop.permute.xlu0 %586
      %v588 = vmax.f32 %v513, %v539
      %v589 = vmax.f32 %v514, %v541
      %v590 = vmax.f32 %v515, %v543
      %v591 = vmax.f32 %v516, %v545
      %v592 = vmax.f32 %v517, %v547
      %v593 = vmax.f32 %v518, %v549
      %v594 = vmax.f32 %v519, %v551
      %v595 = vmax.f32 %v520, %v553
      %v596 = vmax.f32 %v521, %v555
      %v597 = vmax.f32 %v522, %v557
      %v598 = vmax.f32 %v523, %v559
      %v599 = vmax.f32 %v524, %v561
      %v600 = vmax.f32 %v525, %v563
      %v601 = vmax.f32 %v526, %v565
      %v602 = vmax.f32 %v527, %v567
      %v603 = vmax.f32 %v528, %v569
      %v604 = vmax.f32 %v529, %v571
      %v605 = vmax.f32 %v530, %v573
      %v606 = vmax.f32 %v531, %v575
      %v607 = vmax.f32 %v532, %v577
      %v608 = vmax.f32 %v533, %v579
      %v609 = vmax.f32 %v534, %v581
      %v610 = vmax.f32 %v535, %v583
      %v611 = vmax.f32 %v536, %v585
      %v612 = vmax.f32 %v537, %v587
      %v613 = vld [vmem:[%s2] sm:$0x1]
      %v615 = vlaneseq
      %v616 = vshrl.u32 %v615, 7
      %v617 = vsub.s32 0, %v616
      %v618 = vrot.slane %v613, %v617
      %v620 = vadd.f32 %v588, %v618
      %v621 = vadd.f32 %v589, %v618
      %v622 = vadd.f32 %v590, %v618
      %v623 = vadd.f32 %v591, %v618
      %v624 = vadd.f32 %v592, %v618
      %v625 = vadd.f32 %v593, %v618
      %v626 = vadd.f32 %v594, %v618
      %v627 = vadd.f32 %v595, %v618
      %v628 = vadd.f32 %v596, %v618
      %v629 = vadd.f32 %v597, %v618
      %v630 = vadd.f32 %v598, %v618
      %v631 = vadd.f32 %v599, %v618
      %v632 = vadd.f32 %v600, %v618
      %v633 = vadd.f32 %v601, %v618
      %v634 = vadd.f32 %v602, %v618
      %v635 = vadd.f32 %v603, %v618
      %v636 = vadd.f32 %v604, %v618
      %v637 = vadd.f32 %v605, %v618
      %v638 = vadd.f32 %v606, %v618
      %v639 = vadd.f32 %v607, %v618
      %v640 = vadd.f32 %v608, %v618
      %v641 = vadd.f32 %v609, %v618
      %v642 = vadd.f32 %v610, %v618
      %v643 = vadd.f32 %v611, %v618
      %v644 = vadd.f32 %v612, %v618
      %v645 = vmax.f32 %v620, 0.0
      %v646 = vmax.f32 %v621, 0.0
      %v647 = vmax.f32 %v622, 0.0
      %v648 = vmax.f32 %v623, 0.0
      %v649 = vmax.f32 %v624, 0.0
      %v650 = vmax.f32 %v625, 0.0
      %v651 = vmax.f32 %v626, 0.0
      %v652 = vmax.f32 %v627, 0.0
      %v653 = vmax.f32 %v628, 0.0
      %v654 = vmax.f32 %v629, 0.0
      %v655 = vmax.f32 %v630, 0.0
      %v656 = vmax.f32 %v631, 0.0
      %v657 = vmax.f32 %v632, 0.0
      %v658 = vmax.f32 %v633, 0.0
      %v659 = vmax.f32 %v634, 0.0
      %v660 = vmax.f32 %v635, 0.0
      %v661 = vmax.f32 %v636, 0.0
      %v662 = vmax.f32 %v637, 0.0
      %v663 = vmax.f32 %v638, 0.0
      %v664 = vmax.f32 %v639, 0.0
      %v665 = vmax.f32 %v640, 0.0
      %v666 = vmax.f32 %v641, 0.0
      %v667 = vmax.f32 %v642, 0.0
      %v668 = vmax.f32 %v643, 0.0
      %v669 = vmax.f32 %v644, 0.0
      %v670 = vpack.c.bf16 %v646, %v645
      %v671 = vpack.c.bf16 %v648, %v647
      %v672 = vpack.c.bf16 %v650, %v649
      %v673 = vpack.c.bf16 %v652, %v651
      %v674 = vpack.c.bf16 %v654, %v653
      %v675 = vpack.c.bf16 %v656, %v655
      %v676 = vpack.c.bf16 %v658, %v657
      %v677 = vpack.c.bf16 %v660, %v659
      %v678 = vpack.c.bf16 %v662, %v661
      %v679 = vpack.c.bf16 %v664, %v663
      %v680 = vpack.c.bf16 %v666, %v665
      %v681 = vpack.c.bf16 %v668, %v667
      %v682 = vpack.c.bf16 %v669, %v669
      %v696 = vunpack.c.l.b16 %v670
      %v697 = vunpack.c.h.b16 %v670
      %v698 = vunpack.c.l.b16 %v671
      %v699 = vunpack.c.h.b16 %v671
      %v700 = vunpack.c.l.b16 %v672
      %v701 = vunpack.c.h.b16 %v672
      %v702 = vunpack.c.l.b16 %v673
      %v703 = vunpack.c.h.b16 %v673
      %v704 = vunpack.c.l.b16 %v674
      %v705 = vunpack.c.h.b16 %v674
      %v706 = vunpack.c.l.b16 %v675
      %v707 = vunpack.c.h.b16 %v675
      %v708 = vunpack.c.l.b16 %v676
      %v709 = vunpack.c.h.b16 %v676
      %v710 = vunpack.c.l.b16 %v677
      %v711 = vunpack.c.h.b16 %v677
      %v712 = vunpack.c.l.b16 %v678
      %v713 = vunpack.c.h.b16 %v678
      %v714 = vunpack.c.l.b16 %v679
      %v715 = vunpack.c.h.b16 %v679
      %v716 = vunpack.c.l.b16 %v680
      %v717 = vunpack.c.h.b16 %v680
      %v718 = vunpack.c.l.b16 %v681
      %v719 = vunpack.c.h.b16 %v681
      %v720 = vunpack.c.l.b16 %v682
      %v721 = vpack.c.b16 %v696, %v696
      %v722 = vpack.c.b16 %v697, %v697
      %v723 = vpack.c.b16 %v698, %v698
      %v724 = vpack.c.b16 %v699, %v699
      %v725 = vpack.c.b16 %v700, %v700
      %v726 = vpack.c.b16 %v701, %v701
      %v727 = vpack.c.b16 %v702, %v702
      %v728 = vpack.c.b16 %v703, %v703
      %v729 = vpack.c.b16 %v704, %v704
      %v730 = vpack.c.b16 %v705, %v705
      %v731 = vpack.c.b16 %v706, %v706
      %v732 = vpack.c.b16 %v707, %v707
      %v733 = vpack.c.b16 %v708, %v708
      %v734 = vpack.c.b16 %v709, %v709
      %v735 = vpack.c.b16 %v710, %v710
      %v736 = vpack.c.b16 %v711, %v711
      %v737 = vpack.c.b16 %v712, %v712
      %v738 = vpack.c.b16 %v713, %v713
      %v739 = vpack.c.b16 %v714, %v714
      %v740 = vpack.c.b16 %v715, %v715
      %v741 = vpack.c.b16 %v716, %v716
      %v742 = vpack.c.b16 %v717, %v717
      %v743 = vpack.c.b16 %v718, %v718
      %v744 = vpack.c.b16 %v719, %v719
      %v745 = vpack.c.b16 %v720, %v720
      %771 = vst [vmem:[%s172] sm:$0xf] %v721
      %772 = vst [vmem:[%s172 + $0x4] sm:$0xf] %v722
      %773 = vst [vmem:[%s172 + $0x8] sm:$0xf] %v723
      %774 = vst [vmem:[%s172 + $0xc] sm:$0xf] %v724
      %775 = vst [vmem:[%s172 + $0x10] sm:$0xf] %v725
      %776 = vst [vmem:[%s172 + $0x14] sm:$0xf] %v726
      %777 = vst [vmem:[%s172 + $0x18] sm:$0xf] %v727
      %778 = vst [vmem:[%s172 + $0x1c] sm:$0xf] %v728
      %779 = vst [vmem:[%s172 + $0x20] sm:$0xf] %v729
      %780 = vst [vmem:[%s172 + $0x24] sm:$0xf] %v730
      %781 = vst [vmem:[%s172 + $0x28] sm:$0xf] %v731
      %782 = vst [vmem:[%s172 + $0x2c] sm:$0xf] %v732
      %783 = vst [vmem:[%s172 + $0x30] sm:$0xf] %v733
      %784 = vst [vmem:[%s172 + $0x34] sm:$0xf] %v734
      %785 = vst [vmem:[%s172 + $0x38] sm:$0xf] %v735
      %786 = vst [vmem:[%s172 + $0x3c] sm:$0xf] %v736
      %787 = vst [vmem:[%s172 + $0x40] sm:$0xf] %v737
      %788 = vst [vmem:[%s172 + $0x44] sm:$0xf] %v738
      %789 = vst [vmem:[%s172 + $0x48] sm:$0xf] %v739
      %790 = vst [vmem:[%s172 + $0x4c] sm:$0xf] %v740
      %791 = vst [vmem:[%s172 + $0x50] sm:$0xf] %v741
      %792 = vst [vmem:[%s172 + $0x54] sm:$0xf] %v742
      %793 = vst [vmem:[%s172 + $0x58] sm:$0xf] %v743
      %794 = vst [vmem:[%s172 + $0x5c] sm:$0xf] %v744
      %795 = vst [vmem:[%s172 + $0x60] sm:$0xf] %v745
      %s796 = smul.u32 25, %s14
      %p797 = scmp.lt.s32.totalorder %s796, 49
      %s798 = scalar_select %p797, %s796, 49
      %s799 = smul.addr %s798, 4
      %s800 = scalar_lea.vmem %s3, %s799
      // Predicated region
      $region33: #{cnn_forward.3} parent=31 // pred_check
        %p801 = pneg %p100
      $region34: #{cnn_forward.3} parent=31 // pred_check_branch
        %803 = sbr.rel (%p801) target = $region36
      $region35: #{cnn_forward.3} parent=31 // pred_region
        %s804 = smul.u32 25, %s14
      $region36: #{cnn_forward.3} parent=31 // pred_fallthru
        _
    $region32: #{cnn_forward.3} parent=5 // pred_fallthru
      _
    %p805 = scmp.le.s32.totalorder 2, %s9
    // Predicated region
    $region37: #{cnn_forward.3} parent=5 // pred_check
      %p806 = pneg %p805
    $region38: #{cnn_forward.3} parent=5 // pred_check_branch
      %808 = sbr.rel (%p806) target = $region40
    $region39: #{cnn_forward.3} parent=5 // pred_region
      %s809 = ssub.s32 %s9, 2
      // Predicated region
      $region41: #{cnn_forward.3} parent=39 // pred_check
        %p810 = pneg %p106
      $region42: #{cnn_forward.3} parent=39 // pred_check_branch
        %812 = sbr.rel (%p810) target = $region44
      $region43: #{cnn_forward.3} parent=39 // pred_region
        %s813 = smul.u32 25, %s15
        %p814 = scmp.lt.s32.totalorder %s813, 49
        %s815 = scalar_select %p814, %s813, 49
        %s816 = smul.addr %s815, 4
        %s817 = scalar_lea.vmem %s3, %s816
      $region44: #{cnn_forward.3} parent=39 // pred_fallthru
        _
    $region40: #{cnn_forward.3} parent=5 // pred_fallthru
      _
  $region6: #{cnn_forward.3} parent=0 // loop_footer
    %s13 = sadd.s32 1, %s9
  $region7: #{cnn_forward.3} parent=0 // loop_footer_branch
    %8 = sbr.rel target = $region3
  $region8: #{cnn_forward.3} parent=0 // loop_exit
    _

// kernel: cnn_forward.4
$region0: #{cnn_forward.4}
  #allocation0 [shape = 'u32[]', space=smem, size = 0x4, offset = 0x4, fixed_abs, tag = 'smem constant byte address 0x4 - core index']
  #allocation1 [shape = 'u32[144,128]{1,0:T(1,128)}', space=vmem, size = 0x12000, scoped, tag = 'internal scratch']
  %s0 = inlined_call_operand.vmem [shape: bf16[112,576], index: 0, kind: input, shape index: {}]
  %s1 = inlined_call_operand.vmem [shape: bf16[576,128], index: 1, kind: input, shape index: {}]
  %s2 = inlined_call_operand.vmem [shape: f32[1,128], index: 2, kind: input, shape index: {}]
  %s3 = inlined_call_operand.vmem [shape: bf16[112,128], index: 3, kind: output, shape index: {}]
  %s4 = sld [smem:[#allocation0]]
  $region45: #{cnn_forward.4} parent=0
    _
  %s6 = ssub.s32 1, %s4
  %s7 = scalar_select 0, %s6, %s4
  loop: start=0, step=1, limit=4
  $region2: #{cnn_forward.4} parent=0 // loop_pre_header
    _
  $region3: #{cnn_forward.4} parent=0 // loop_header
    %s9 = sphi 0, %s13
    %p10 = scmp.ge.s32.totalorder %s9, 4
    %s19 = sphi 0, %s21
    %s22 = sphi 0, %s19
    %s23 = sphi 0, %s22
    %s39 = sphi 0, %s23
    %s43 = sphi 0, %s43
    %s45 = sphi 0, %s43
    %s46 = sphi 0, %s45
    %s60 = sphi 0, %s46
    %s64 = sphi 0, %s64
    %s66 = sphi 0, %s64
    %s67 = sphi 0, %s66
    %s81 = sphi 0, %s67
    %s87 = sphi 0, %s89
    %s90 = sphi 0, %s87
    %s91 = sphi 0, %s90
    %s107 = sphi 0, %s91
  $region4: #{cnn_forward.4} parent=0 // loop_header_branch
    %12 = sbr.rel (%p10) target = $region8
  $region5: #{cnn_forward.4} parent=0 // loop_body
    %s14 = ssub.s32 %s9, 1
    %s15 = ssub.s32 %s9, 2
    %s16 = sadd.s32 %s9, 1
    %s17 = ssub.s32 %s9, %s16
    %p18 = scmp.eq.s32.totalorder %s17, 0
    %s20 = sadd.s32 %s19, 1
    %s21 = scalar_select %p18, %s19, %s20
    %p24 = pneg %p18
    %p25 = scmp.eq.s32.totalorder %s9, 1
    %p26 = por %p24, %p25
    %p27 = scmp.ne.s32.totalorder %s19, %s22
    %p28 = scmp.eq.s32.totalorder %s9, 0
    %p29 = por %p27, %p28
    %p30 = scmp.ne.s32.totalorder %s19, %s22
    %p31 = scmp.eq.s32.totalorder %s14, 1
    %p32 = por %p30, %p31
    %p33 = scmp.ne.s32.totalorder %s22, %s23
    %p34 = scmp.eq.s32.totalorder %s14, 0
    %p35 = por %p33, %p34
    %p36 = scmp.ne.s32.totalorder %s22, %s23
    %p37 = scmp.eq.s32.totalorder %s15, 1
    %p38 = por %p36, %p37
    %p40 = scmp.ne.s32.totalorder %s23, %s39
    %p41 = scmp.eq.s32.totalorder %s15, 0
    %p42 = por %p40, %p41
    %s44 = sadd.s32 %s43, 1
    %p47 = scmp.eq.s32.totalorder %s9, 1
    %p48 = scmp.ne.s32.totalorder %s43, %s45
    %p49 = scmp.eq.s32.totalorder %s9, 0
    %p50 = por %p48, %p49
    %p51 = scmp.ne.s32.totalorder %s43, %s45
    %p52 = scmp.eq.s32.totalorder %s14, 1
    %p53 = por %p51, %p52
    %p54 = scmp.ne.s32.totalorder %s45, %s46
    %p55 = scmp.eq.s32.totalorder %s14, 0
    %p56 = por %p54, %p55
    %p57 = scmp.ne.s32.totalorder %s45, %s46
    %p58 = scmp.eq.s32.totalorder %s15, 1
    %p59 = por %p57, %p58
    %p61 = scmp.ne.s32.totalorder %s46, %s60
    %p62 = scmp.eq.s32.totalorder %s15, 0
    %p63 = por %p61, %p62
    %s65 = sadd.s32 %s64, 1
    %p68 = scmp.eq.s32.totalorder %s9, 1
    %p69 = scmp.ne.s32.totalorder %s64, %s66
    %p70 = scmp.eq.s32.totalorder %s9, 0
    %p71 = por %p69, %p70
    %p72 = scmp.ne.s32.totalorder %s64, %s66
    %p73 = scmp.eq.s32.totalorder %s14, 1
    %p74 = por %p72, %p73
    %p75 = scmp.ne.s32.totalorder %s66, %s67
    %p76 = scmp.eq.s32.totalorder %s14, 0
    %p77 = por %p75, %p76
    %p78 = scmp.ne.s32.totalorder %s66, %s67
    %p79 = scmp.eq.s32.totalorder %s15, 1
    %p80 = por %p78, %p79
    %p82 = scmp.ne.s32.totalorder %s67, %s81
    %p83 = scmp.eq.s32.totalorder %s15, 0
    %p84 = por %p82, %p83
    %s85 = ssub.s32 %s9, %s16
    %p86 = scmp.eq.s32.totalorder %s85, 0
    %s88 = sadd.s32 %s87, 1
    %s89 = scalar_select %p86, %s87, %s88
    %p92 = pneg %p86
    %p93 = scmp.eq.s32.totalorder %s9, 1
    %p94 = por %p92, %p93
    %p95 = scmp.ne.s32.totalorder %s87, %s90
    %p96 = scmp.eq.s32.totalorder %s9, 0
    %p97 = por %p95, %p96
    %p98 = scmp.ne.s32.totalorder %s87, %s90
    %p99 = scmp.eq.s32.totalorder %s14, 1
    %p100 = por %p98, %p99
    %p101 = scmp.ne.s32.totalorder %s90, %s91
    %p102 = scmp.eq.s32.totalorder %s14, 0
    %p103 = por %p101, %p102
    %p104 = scmp.ne.s32.totalorder %s90, %s91
    %p105 = scmp.eq.s32.totalorder %s15, 1
    %p106 = por %p104, %p105
    %p108 = scmp.ne.s32.totalorder %s91, %s107
    %p109 = scmp.eq.s32.totalorder %s15, 0
    %p110 = por %p108, %p109
    %p111 = scmp.le.s32.totalorder 1, %s9
    %p112 = scmp.lt.s32.totalorder %s9, 3
    %p113 = pnand %p111, %p112
    %p114 = pneg %p113
    // Predicated region
    $region9: #{cnn_forward.4} parent=5 // pred_check
      _
    $region10: #{cnn_forward.4} parent=5 // pred_check_branch
      %116 = sbr.rel (%p113) target = $region12
    $region11: #{cnn_forward.4} parent=5 // pred_region
      %s117 = ssub.s32 %s9, 1
      // Predicated region
      $region13: #{cnn_forward.4} parent=11 // pred_check
        %p118 = pneg %p56
      $region14: #{cnn_forward.4} parent=11 // pred_check_branch
        %120 = sbr.rel (%p118) target = $region16
      $region15: #{cnn_forward.4} parent=11 // pred_region
        _
      $region16: #{cnn_forward.4} parent=11 // pred_fallthru
        _
      // Predicated region
      $region17: #{cnn_forward.4} parent=11 // pred_check
        %p121 = pneg %p77
      $region18: #{cnn_forward.4} parent=11 // pred_check_branch
        %123 = sbr.rel (%p121) target = $region20
      $region19: #{cnn_forward.4} parent=11 // pred_region
        _
      $region20: #{cnn_forward.4} parent=11 // pred_fallthru
        _
    $region12: #{cnn_forward.4} parent=5 // pred_fallthru
      _
    %p124 = scmp.lt.s32.totalorder %s9, 2
    // Predicated region
    $region21: #{cnn_forward.4} parent=5 // pred_check
      %p125 = pneg %p124
    $region22: #{cnn_forward.4} parent=5 // pred_check_branch
      %127 = sbr.rel (%p125) target = $region24
    $region23: #{cnn_forward.4} parent=5 // pred_region
      // Predicated region
      $region25: #{cnn_forward.4} parent=23 // pred_check
        %p128 = pneg %p29
      $region26: #{cnn_forward.4} parent=23 // pred_check_branch
        %130 = sbr.rel (%p128) target = $region28
      $region27: #{cnn_forward.4} parent=23 // pred_region
        %s131 = smul.u32 7, %s9
        %p132 = scmp.lt.s32.totalorder %s131, 13
        %s133 = scalar_select %p132, %s131, 13
        %s134 = smul.addr %s133, 5
        %s135 = smul.addr %s134, 4
        %s136 = scalar_lea.vmem %s0, %s135
        %s137 = smul.u32 7, %s9
      $region28: #{cnn_forward.4} parent=23 // pred_fallthru
        _
    $region24: #{cnn_forward.4} parent=5 // pred_fallthru
      _
    %p138 = scmp.le.s32.totalorder 1, %s9
    %p139 = scmp.lt.s32.totalorder %s9, 3
    %p140 = pnand %p138, %p139
    %p141 = pneg %p140
    // Predicated region
    $region29: #{cnn_forward.4} parent=5 // pred_check
      _
    $region30: #{cnn_forward.4} parent=5 // pred_check_branch
      %143 = sbr.rel (%p140) target = $region32
    $region31: #{cnn_forward.4} parent=5 // pred_region
      %s144 = ssub.s32 %s9, 1
      %s145 = smul.u32 7, %s14
      %p146 = scmp.lt.s32.totalorder %s145, 13
      %s147 = scalar_select %p146, %s145, 13
      %s148 = smul.addr %s147, 5
      %s149 = smul.addr %s148, 4
      %s150 = scalar_lea.vmem %s0, %s149
      %p151 = pneg %p35
      %p152 = pneg %p32
      %p153 = pneg %p56
      %p154 = pneg %p53
      %p155 = pneg %p77
      %p156 = pneg %p74
      %p157 = pneg %p103
      %p158 = pneg %p100
      %s159 = smul.u32 7, %s14
      %p160 = scmp.lt.s32.totalorder %s159, 13
      %s161 = scalar_select %p160, %s159, 13
      %s162 = smul.addr %s161, 4
      %s163 = scalar_lea.vmem %s3, %s162
      %s164 = smul.u32 7, %s14
      %p165 = scmp.lt.s32.totalorder %s164, 13
      %s166 = scalar_select %p165, %s164, 13
      %s167 = smul.addr %s166, 5
      %s168 = smul.addr %s167, 4
      %s169 = scalar_lea.vmem %s0, %s168
      %s170 = smul.u32 7, %s14
      %s171 = smul.u32 7, %s14
      %p172 = scmp.lt.s32.totalorder %s171, 13
      %s173 = scalar_select %p172, %s171, 13
      %s174 = smul.addr %s173, 4
      %s175 = scalar_lea.vmem %s3, %s174
      %s176 = smul.u32 7, %s14
      %v178 = vld [vmem:[%s169] sm:$0xff]
      %v179 = vld [vmem:[%s169 + $0x8] sm:$0xff]
      %v180 = vld [vmem:[%s169 + $0x10] sm:$0xf]
      %v181 = vld [vmem:[%s169 + $0x14] sm:$0xff]
      %v182 = vld [vmem:[%s169 + $0x1c] sm:$0xff]
      %v183 = vld [vmem:[%s169 + $0x24] sm:$0xf]
      %v184 = vld [vmem:[%s169 + $0x28] sm:$0xff]
      %v185 = vld [vmem:[%s169 + $0x30] sm:$0xff]
      %v186 = vld [vmem:[%s169 + $0x38] sm:$0xf]
      %v187 = vld [vmem:[%s169 + $0x3c] sm:$0xff]
      %v188 = vld [vmem:[%s169 + $0x44] sm:$0xff]
      %v189 = vld [vmem:[%s169 + $0x4c] sm:$0xf]
      %v190 = vld [vmem:[%s169 + $0x50] sm:$0xff]
      %v191 = vld [vmem:[%s169 + $0x58] sm:$0xff]
      %v192 = vld [vmem:[%s169 + $0x60] sm:$0xf]
      %v193 = vld [vmem:[%s169 + $0x64] sm:$0xff]
      %v194 = vld [vmem:[%s169 + $0x6c] sm:$0xff]
      %v195 = vld [vmem:[%s169 + $0x74] sm:$0xf]
      %v196 = vld [vmem:[%s169 + $0x78] sm:$0xff]
      %v197 = vld [vmem:[%s169 + $0x80] sm:$0xff]
      %v198 = vld [vmem:[%s169 + $0x88] sm:$0xf]
      %v199 = vld [vmem:[%s1] sm:$0xf]
      %v200 = vld [vmem:[%s1 + $0x4] sm:$0xf]
      %v201 = vld [vmem:[%s1 + $0x8] sm:$0xf]
      %v202 = vld [vmem:[%s1 + $0xc] sm:$0xf]
      %v203 = vld [vmem:[%s1 + $0x10] sm:$0xf]
      %v204 = vld [vmem:[%s1 + $0x14] sm:$0xf]
      %v205 = vld [vmem:[%s1 + $0x18] sm:$0xf]
      %v206 = vld [vmem:[%s1 + $0x1c] sm:$0xf]
      %v207 = vld [vmem:[%s1 + $0x20] sm:$0xf]
      %v208 = vld [vmem:[%s1 + $0x24] sm:$0xf]
      %v209 = vld [vmem:[%s1 + $0x28] sm:$0xf]
      %v210 = vld [vmem:[%s1 + $0x2c] sm:$0xf]
      %v211 = vld [vmem:[%s1 + $0x30] sm:$0xf]
      %v212 = vld [vmem:[%s1 + $0x34] sm:$0xf]
      %v213 = vld [vmem:[%s1 + $0x38] sm:$0xf]
      %v214 = vld [vmem:[%s1 + $0x3c] sm:$0xf]
      %v215 = vld [vmem:[%s1 + $0x40] sm:$0xf]
      %v216 = vld [vmem:[%s1 + $0x44] sm:$0xf]
      %v217 = vld [vmem:[%s1 + $0x48] sm:$0xf]
      %v218 = vld [vmem:[%s1 + $0x4c] sm:$0xf]
      %v219 = vld [vmem:[%s1 + $0x50] sm:$0xf]
      %v220 = vld [vmem:[%s1 + $0x54] sm:$0xf]
      %v221 = vld [vmem:[%s1 + $0x58] sm:$0xf]
      %v222 = vld [vmem:[%s1 + $0x5c] sm:$0xf]
      %v223 = vld [vmem:[%s1 + $0x60] sm:$0xf]
      %v224 = vld [vmem:[%s1 + $0x64] sm:$0xf]
      %v225 = vld [vmem:[%s1 + $0x68] sm:$0xf]
      %v226 = vld [vmem:[%s1 + $0x6c] sm:$0xf]
      %v227 = vld [vmem:[%s1 + $0x70] sm:$0xf]
      %v228 = vld [vmem:[%s1 + $0x74] sm:$0xf]
      %v229 = vld [vmem:[%s1 + $0x78] sm:$0xf]
      %v230 = vld [vmem:[%s1 + $0x7c] sm:$0xf]
      %v231 = vld [vmem:[%s1 + $0x80] sm:$0xf]
      %v232 = vld [vmem:[%s1 + $0x84] sm:$0xf]
      %v233 = vld [vmem:[%s1 + $0x88] sm:$0xf]
      %v234 = vld [vmem:[%s1 + $0x8c] sm:$0xf]
      %v235 = vld [vmem:[%s1 + $0x90] sm:$0xf]
      %v236 = vld [vmem:[%s1 + $0x94] sm:$0xf]
      %v237 = vld [vmem:[%s1 + $0x98] sm:$0xf]
      %v238 = vld [vmem:[%s1 + $0x9c] sm:$0xf]
      %v239 = vld [vmem:[%s1 + $0xa0] sm:$0xf]
      %v240 = vld [vmem:[%s1 + $0xa4] sm:$0xf]
      %v241 = vld [vmem:[%s1 + $0xa8] sm:$0xf]
      %v242 = vld [vmem:[%s1 + $0xac] sm:$0xf]
      %v243 = vld [vmem:[%s1 + $0xb0] sm:$0xf]
      %v244 = vld [vmem:[%s1 + $0xb4] sm:$0xf]
      %v245 = vld [vmem:[%s1 + $0xb8] sm:$0xf]
      %v246 = vld [vmem:[%s1 + $0xbc] sm:$0xf]
      %v247 = vld [vmem:[%s1 + $0xc0] sm:$0xf]
      %v248 = vld [vmem:[%s1 + $0xc4] sm:$0xf]
      %v249 = vld [vmem:[%s1 + $0xc8] sm:$0xf]
      %v250 = vld [vmem:[%s1 + $0xcc] sm:$0xf]
      %v251 = vld [vmem:[%s1 + $0xd0] sm:$0xf]
      %v252 = vld [vmem:[%s1 + $0xd4] sm:$0xf]
      %v253 = vld [vmem:[%s1 + $0xd8] sm:$0xf]
      %v254 = vld [vmem:[%s1 + $0xdc] sm:$0xf]
      %v255 = vld [vmem:[%s1 + $0xe0] sm:$0xf]
      %v256 = vld [vmem:[%s1 + $0xe4] sm:$0xf]
      %v257 = vld [vmem:[%s1 + $0xe8] sm:$0xf]
      %v258 = vld [vmem:[%s1 + $0xec] sm:$0xf]
      %v259 = vld [vmem:[%s1 + $0xf0] sm:$0xf]
      %v260 = vld [vmem:[%s1 + $0xf4] sm:$0xf]
      %v261 = vld [vmem:[%s1 + $0xf8] sm:$0xf]
      %v262 = vld [vmem:[%s1 + $0xfc] sm:$0xf]
      %v263 = vld [vmem:[%s1 + $0x100] sm:$0xf]
      %v264 = vld [vmem:[%s1 + $0x104] sm:$0xf]
      %v265 = vld [vmem:[%s1 + $0x108] sm:$0xf]
      %v266 = vld [vmem:[%s1 + $0x10c] sm:$0xf]
      %v267 = vld [vmem:[%s1 + $0x110] sm:$0xf]
      %v268 = vld [vmem:[%s1 + $0x114] sm:$0xf]
      %v269 = vld [vmem:[%s1 + $0x118] sm:$0xf]
      %v270 = vld [vmem:[%s1 + $0x11c] sm:$0xf]
      %v292 = vunpack.c.l.b16 %v178
      %v293 = vunpack.c.h.b16 %v178
      %v294 = vunpack.c.l.b16 %v179
      %v295 = vunpack.c.h.b16 %v179
      %v296 = vunpack.c.l.b16 %v180
      %v297 = vunpack.c.l.b16 %v181
      %v298 = vunpack.c.h.b16 %v181
      %v299 = vunpack.c.l.b16 %v182
      %v300 = vunpack.c.h.b16 %v182
      %v301 = vunpack.c.l.b16 %v183
      %v302 = vunpack.c.l.b16 %v184
      %v303 = vunpack.c.h.b16 %v184
      %v304 = vunpack.c.l.b16 %v185
      %v305 = vunpack.c.h.b16 %v185
      %v306 = vunpack.c.l.b16 %v186
      %v307 = vunpack.c.l.b16 %v187
      %v308 = vunpack.c.h.b16 %v187
      %v309 = vunpack.c.l.b16 %v188
      %v310 = vunpack.c.h.b16 %v188
      %v311 = vunpack.c.l.b16 %v189
      %v312 = vunpack.c.l.b16 %v190
      %v313 = vunpack.c.h.b16 %v190
      %v314 = vunpack.c.l.b16 %v191
      %v315 = vunpack.c.h.b16 %v191
      %v316 = vunpack.c.l.b16 %v192
      %v317 = vunpack.c.l.b16 %v193
      %v318 = vunpack.c.h.b16 %v193
      %v319 = vunpack.c.l.b16 %v194
      %v320 = vunpack.c.h.b16 %v194
      %v321 = vunpack.c.l.b16 %v195
      %v322 = vunpack.c.l.b16 %v196
      %v323 = vunpack.c.h.b16 %v196
      %v324 = vunpack.c.l.b16 %v197
      %v325 = vunpack.c.h.b16 %v197
      %v326 = vunpack.c.l.b16 %v198
      %v327 = vpack.c.b16 %v297, %v292
      %v328 = vpack.c.b16 %v298, %v293
      %v329 = vpack.c.b16 %v299, %v294
      %v330 = vpack.c.b16 %v300, %v295
      %v331 = vpack.c.b16 %v301, %v296
      %v332 = vpack.c.b16 %v307, %v302
      %v333 = vpack.c.b16 %v308, %v303
      %v334 = vpack.c.b16 %v309, %v304
      %v335 = vpack.c.b16 %v310, %v305
      %v336 = vpack.c.b16 %v311, %v306
      %v337 = vpack.c.b16 %v317, %v312
      %v338 = vpack.c.b16 %v318, %v313
      %v339 = vpack.c.b16 %v319, %v314
      %v340 = vpack.c.b16 %v320, %v315
      %v341 = vpack.c.b16 %v321, %v316
      %v342 = vpack.c.b16 %v322, %v322
      %v343 = vpack.c.b16 %v323, %v323
      %v344 = vpack.c.b16 %v324, %v324
      %v345 = vpack.c.b16 %v325, %v325
      %v346 = vpack.c.b16 %v326, %v326
      %v435 = vunpack.c.l.b16 %v199
      %v436 = vunpack.c.l.b16 %v200
      %v437 = vunpack.c.l.b16 %v201
      %v438 = vunpack.c.l.b16 %v202
      %v439 = vunpack.c.l.b16 %v203
      %v440 = vunpack.c.l.b16 %v204
      %v441 = vunpack.c.l.b16 %v205
      %v442 = vunpack.c.l.b16 %v206
      %v443 = vunpack.c.l.b16 %v207
      %v444 = vunpack.c.l.b16 %v208
      %v445 = vunpack.c.l.b16 %v209
      %v446 = vunpack.c.l.b16 %v210
      %v447 = vunpack.c.l.b16 %v211
      %v448 = vunpack.c.l.b16 %v212
      %v449 = vunpack.c.l.b16 %v213
      %v450 = vunpack.c.l.b16 %v214
      %v451 = vunpack.c.l.b16 %v215
      %v452 = vunpack.c.l.b16 %v216
      %v453 = vunpack.c.l.b16 %v217
      %v454 = vunpack.c.l.b16 %v218
      %v455 = vunpack.c.l.b16 %v219
      %v456 = vunpack.c.l.b16 %v220
      %v457 = vunpack.c.l.b16 %v221
      %v458 = vunpack.c.l.b16 %v222
      %v459 = vunpack.c.l.b16 %v223
      %v460 = vunpack.c.l.b16 %v224
      %v461 = vunpack.c.l.b16 %v225
      %v462 = vunpack.c.l.b16 %v226
      %v463 = vunpack.c.l.b16 %v227
      %v464 = vunpack.c.l.b16 %v228
      %v465 = vunpack.c.l.b16 %v229
      %v466 = vunpack.c.l.b16 %v230
      %v467 = vunpack.c.l.b16 %v231
      %v468 = vunpack.c.l.b16 %v232
      %v469 = vunpack.c.l.b16 %v233
      %v470 = vunpack.c.l.b16 %v234
      %v471 = vunpack.c.l.b16 %v235
      %v472 = vunpack.c.l.b16 %v236
      %v473 = vunpack.c.l.b16 %v237
      %v474 = vunpack.c.l.b16 %v238
      %v475 = vunpack.c.l.b16 %v239
      %v476 = vunpack.c.l.b16 %v240
      %v477 = vunpack.c.l.b16 %v241
      %v478 = vunpack.c.l.b16 %v242
      %v479 = vunpack.c.l.b16 %v243
      %v480 = vunpack.c.l.b16 %v244
      %v481 = vunpack.c.l.b16 %v245
      %v482 = vunpack.c.l.b16 %v246
      %v483 = vunpack.c.l.b16 %v247
      %v484 = vunpack.c.l.b16 %v248
      %v485 = vunpack.c.l.b16 %v249
      %v486 = vunpack.c.l.b16 %v250
      %v487 = vunpack.c.l.b16 %v251
      %v488 = vunpack.c.l.b16 %v252
      %v489 = vunpack.c.l.b16 %v253
      %v490 = vunpack.c.l.b16 %v254
      %v491 = vunpack.c.l.b16 %v255
      %v492 = vunpack.c.l.b16 %v256
      %v493 = vunpack.c.l.b16 %v257
      %v494 = vunpack.c.l.b16 %v258
      %v495 = vunpack.c.l.b16 %v259
      %v496 = vunpack.c.l.b16 %v260
      %v497 = vunpack.c.l.b16 %v261
      %v498 = vunpack.c.l.b16 %v262
      %v499 = vunpack.c.l.b16 %v263
      %v500 = vunpack.c.l.b16 %v264
      %v501 = vunpack.c.l.b16 %v265
      %v502 = vunpack.c.l.b16 %v266
      %v503 = vunpack.c.l.b16 %v267
      %v504 = vunpack.c.l.b16 %v268
      %v505 = vunpack.c.l.b16 %v269
      %v506 = vunpack.c.l.b16 %v270
      %v507 = vpack.c.b16 %v436, %v435
      %v508 = vpack.c.b16 %v438, %v437
      %v509 = vpack.c.b16 %v440, %v439
      %v510 = vpack.c.b16 %v442, %v441
      %v511 = vpack.c.b16 %v444, %v443
      %v512 = vpack.c.b16 %v446, %v445
      %v513 = vpack.c.b16 %v448, %v447
      %v514 = vpack.c.b16 %v450, %v449
      %v515 = vpack.c.b16 %v452, %v451
      %v516 = vpack.c.b16 %v454, %v453
      %v517 = vpack.c.b16 %v456, %v455
      %v518 = vpack.c.b16 %v458, %v457
      %v519 = vpack.c.b16 %v460, %v459
      %v520 = vpack.c.b16 %v462, %v461
      %v521 = vpack.c.b16 %v464, %v463
      %v522 = vpack.c.b16 %v466, %v465
      %v523 = vpack.c.b16 %v468, %v467
      %v524 = vpack.c.b16 %v470, %v469
      %v525 = vpack.c.b16 %v472, %v471
      %v526 = vpack.c.b16 %v474, %v473
      %v527 = vpack.c.b16 %v476, %v475
      %v528 = vpack.c.b16 %v478, %v477
      %v529 = vpack.c.b16 %v480, %v479
      %v530 = vpack.c.b16 %v482, %v481
      %v531 = vpack.c.b16 %v484, %v483
      %v532 = vpack.c.b16 %v486, %v485
      %v533 = vpack.c.b16 %v488, %v487
      %v534 = vpack.c.b16 %v490, %v489
      %v535 = vpack.c.b16 %v492, %v491
      %v536 = vpack.c.b16 %v494, %v493
      %v537 = vpack.c.b16 %v496, %v495
      %v538 = vpack.c.b16 %v498, %v497
      %v539 = vpack.c.b16 %v500, %v499
      %v540 = vpack.c.b16 %v502, %v501
      %v541 = vpack.c.b16 %v504, %v503
      %v542 = vpack.c.b16 %v506, %v505
      %vm579 = vcmask 523264
      %v581 = vsel %vm579, %v331, 0
      %v584 = vsel %vm579, %v336, 0
      %v587 = vsel %vm579, %v341, 0
      %v590 = vsel %vm579, %v346, 0
      %592 = vmatprep.subr.bf16.mxu0 0
      %593 = vmatpush1.bf16.msra.mxu0 %v507
      %594 = vmatprep.subr.bf16.mxu0 0
      %595 = vmatpush1.bf16.msra.mxu0 %v508
      %596 = vmatprep.subr.bf16.mxu0 0
      %597 = vmatpush1.bf16.msra.mxu0 %v509
      %598 = vmatprep.subr.bf16.mxu0 0
      %599 = vmatpush1.bf16.msra.mxu0 %v510
      %600 = vmatprep.subr.bf16.mxu0 0
      %601 = vmatpush1.bf16.msra.mxu0 %v511
      %602 = vmatprep.subr.bf16.mxu0 0
      %603 = vmatpush1.bf16.msra.mxu0 %v512
      %604 = vmatprep.subr.bf16.mxu0 0
      %605 = vmatpush1.bf16.msra.mxu0 %v513
      %606 = vmatprep.subr.bf16.mxu0 0
      %607 = vmatpush1.bf16.msra.mxu0 %v514
      %608 = vmatprep.subr.bf16.mxu0 0
      %609 = vmatpush1.bf16.msra.mxu0 %v515
      %610 = vmatprep.subr.bf16.mxu0 0
      %611 = vmatpush1.bf16.msra.mxu0 %v516
      %612 = vmatprep.subr.bf16.mxu0 0
      %613 = vmatpush1.bf16.msra.mxu0 %v517
      %614 = vmatprep.subr.bf16.mxu0 0
      %615 = vmatpush1.bf16.msra.mxu0 %v518
      %616 = vmatprep.subr.bf16.mxu0 0
      %617 = vmatpush1.bf16.msra.mxu0 %v519
      %618 = vmatprep.subr.bf16.mxu0 0
      %619 = vmatpush1.bf16.msra.mxu0 %v520
      %620 = vmatprep.subr.bf16.mxu0 0
      %621 = vmatpush1.bf16.msra.mxu0 %v521
      %622 = vmatprep.subr.bf16.mxu0 0
      %623 = vmatpush1.bf16.msra.mxu0 %v522
      %624 = vmatprep.mubr.bf16.mxu0 %v328
      %625 = vmatmul.mubr.bf16.gmra.mrb[0].mxu0 %v327
      %v626 = vpop.f32.mrb[0].mxu0
      %v627 = vadd.f32 0.0, %v626
      %v628 = vpop.f32.mrb[0].mxu0
      %v629 = vpop.f32.mrb[0].mxu0
      %v630 = vadd.f32 0.0, %v629
      %v631 = vpop.f32.mrb[0].mxu0
      %632 = vmatprep.mubr.bf16.mxu0 %v333
      %633 = vmatmul.mubr.bf16.gmra.mrb[0].mxu0 %v332
      %v634 = vpop.f32.mrb[0].mxu0
      %v635 = vadd.f32 0.0, %v634
      %v636 = vpop.f32.mrb[0].mxu0
      %v637 = vpop.f32.mrb[0].mxu0
      %v638 = vadd.f32 0.0, %v637
      %v639 = vpop.f32.mrb[0].mxu0
      %640 = vmatprep.mubr.bf16.mxu0 %v338
      %641 = vmatmul.mubr.bf16.gmra.mrb[0].mxu0 %v337
      %v642 = vpop.f32.mrb[0].mxu0
      %v643 = vadd.f32 0.0, %v642
      %v644 = vpop.f32.mrb[0].mxu0
      %v645 = vpop.f32.mrb[0].mxu0
      %v646 = vadd.f32 0.0, %v645
      %v647 = vpop.f32.mrb[0].mxu0
      %648 = vmatprep.mubr.bf16.mxu0 %v343
      %649 = vmatmul.mubr.bf16.gmra.mrb[0].mxu0 %v342
      %v650 = vpop.f32.mrb[0].mxu0
      %v651 = vadd.f32 0.0, %v650
      %v652 = vpop.f32.mrb[0].mxu0
      %v653 = vpop.f32.mrb[0].mxu0
      %v654 = vpop.f32.mrb[0].mxu0
      %655 = vdwg.mxu0
      %656 = vmatprep.subr.bf16.mxu0 0
      %657 = vmatpush1.bf16.msra.mxu0 %v523
      %658 = vmatprep.subr.bf16.mxu0 0
      %659 = vmatpush1.bf16.msra.mxu0 %v524
      %660 = vmatprep.subr.bf16.mxu0 0
      %661 = vmatpush1.bf16.msra.mxu0 %v525
      %662 = vmatprep.subr.bf16.mxu0 0
      %663 = vmatpush1.bf16.msra.mxu0 %v526
      %664 = vmatprep.subr.bf16.mxu0 0
      %665 = vmatpush1.bf16.msra.mxu0 %v527
      %666 = vmatprep.subr.bf16.mxu0 0
      %667 = vmatpush1.bf16.msra.mxu0 %v528
      %668 = vmatprep.subr.bf16.mxu0 0
      %669 = vmatpush1.bf16.msra.mxu0 %v529
      %670 = vmatprep.subr.bf16.mxu0 0
      %671 = vmatpush1.bf16.msra.mxu0 %v530
      %672 = vmatprep.subr.bf16.mxu0 0
      %673 = vmatpush1.bf16.msra.mxu0 %v531
      %674 = vmatprep.subr.bf16.mxu0 0
      %675 = vmatpush1.bf16.msra.mxu0 %v532
      %676 = vmatprep.subr.bf16.mxu0 0
      %677 = vmatpush1.bf16.msra.mxu0 %v533
      %678 = vmatprep.subr.bf16.mxu0 0
      %679 = vmatpush1.bf16.msra.mxu0 %v534
      %680 = vmatprep.subr.bf16.mxu0 0
      %681 = vmatpush1.bf16.msra.mxu0 %v535
      %682 = vmatprep.subr.bf16.mxu0 0
      %683 = vmatpush1.bf16.msra.mxu0 %v536
      %684 = vmatprep.subr.bf16.mxu0 0
      %685 = vmatpush1.bf16.msra.mxu0 %v537
      %686 = vmatprep.subr.bf16.mxu0 0
      %687 = vmatpush1.bf16.msra.mxu0 %v538
      %688 = vmatprep.mubr.bf16.mxu0 %v330
      %689 = vmatmul.mubr.bf16.gmra.mrb[0].mxu0 %v329
      %v690 = vpop.f32.mrb[0].mxu0
      %v691 = vadd.f32 %v627, %v690
      %v692 = vpop.f32.mrb[0].mxu0
      %v693 = vpop.f32.mrb[0].mxu0
      %v694 = vadd.f32 %v630, %v693
      %v695 = vpop.f32.mrb[0].mxu0
      %696 = vmatprep.mubr.bf16.mxu0 %v335
      %697 = vmatmul.mubr.bf16.gmra.mrb[0].mxu0 %v334
      %v698 = vpop.f32.mrb[0].mxu0
      %v699 = vadd.f32 %v635, %v698
      %v700 = vpop.f32.mrb[0].mxu0
      %v701 = vpop.f32.mrb[0].mxu0
      %v702 = vadd.f32 %v638, %v701
      %v703 = vpop.f32.mrb[0].mxu0
      %704 = vmatprep.mubr.bf16.mxu0 %v340
      %705 = vmatmul.mubr.bf16.gmra.mrb[0].mxu0 %v339
      %v706 = vpop.f32.mrb[0].mxu0
      %v707 = vadd.f32 %v643, %v706
      %v708 = vpop.f32.mrb[0].mxu0
      %v709 = vpop.f32.mrb[0].mxu0
      %v710 = vadd.f32 %v646, %v709
      %v711 = vpop.f32.mrb[0].mxu0
      %712 = vmatprep.mubr.bf16.mxu0 %v345
      %713 = vmatmul.mubr.bf16.gmra.mrb[0].mxu0 %v344
      %v714 = vpop.f32.mrb[0].mxu0
      %v715 = vadd.f32 %v651, %v714
      %v716 = vpop.f32.mrb[0].mxu0
      %v717 = vpop.f32.mrb[0].mxu0
      %v718 = vpop.f32.mrb[0].mxu0
      %719 = vdwg.mxu0
      %720 = vmatprep.subr.bf16.mxu0 0
      %721 = vmatpush1.bf16.msra.mxu0 %v539
      %722 = vmatprep.subr.bf16.mxu0 0
      %723 = vmatpush1.bf16.msra.mxu0 %v540
      %724 = vmatprep.subr.bf16.mxu0 0
      %725 = vmatpush1.bf16.msra.mxu0 %v541
      %726 = vmatprep.subr.bf16.mxu0 0
      %727 = vmatpush1.bf16.msra.mxu0 %v542
      %728 = vmatprep.subr.bf16.mxu0 0
      %729 = vmatpush1.bf16.msra.mxu0 0
      %730 = vmatprep.subr.bf16.mxu0 0
      %731 = vmatpush1.bf16.msra.mxu0 0
      %732 = vmatprep.subr.bf16.mxu0 0
      %733 = vmatpush1.bf16.msra.mxu0 0
      %734 = vmatprep.subr.bf16.mxu0 0
      %735 = vmatpush1.bf16.msra.mxu0 0
      %736 = vmatprep.subr.bf16.mxu0 0
      %737 = vmatpush1.bf16.msra.mxu0 0
      %738 = vmatprep.subr.bf16.mxu0 0
      %739 = vmatpush1.bf16.msra.mxu0 0
      %740 = vmatprep.subr.bf16.mxu0 0
      %741 = vmatpush1.bf16.msra.mxu0 0
      %742 = vmatprep.subr.bf16.mxu0 0
      %743 = vmatpush1.bf16.msra.mxu0 0
      %744 = vmatprep.subr.bf16.mxu0 0
      %745 = vmatpush1.bf16.msra.mxu0 0
      %746 = vmatprep.subr.bf16.mxu0 0
      %747 = vmatpush1.bf16.msra.mxu0 0
      %748 = vmatprep.subr.bf16.mxu0 0
      %749 = vmatpush1.bf16.msra.mxu0 0
      %750 = vmatprep.subr.bf16.mxu0 0
      %751 = vmatpush1.bf16.msra.mxu0 0
      %752 = vmatprep.mubr.bf16.mxu0 0
      %753 = vmatmul.mubr.bf16.gmra.mrb[0].mxu0 %v581
      %v754 = vpop.f32.mrb[0].mxu0
      %v755 = vadd.f32 %v691, %v754
      %v756 = vpop.f32.mrb[0].mxu0
      %v757 = vpop.f32.mrb[0].mxu0
      %v758 = vadd.f32 %v694, %v757
      %v759 = vpop.f32.mrb[0].mxu0
      %760 = vmatprep.mubr.bf16.mxu0 0
      %761 = vmatmul.mubr.bf16.gmra.mrb[0].mxu0 %v584
      %v762 = vpop.f32.mrb[0].mxu0
      %v763 = vadd.f32 %v699, %v762
      %v764 = vpop.f32.mrb[0].mxu0
      %v765 = vpop.f32.mrb[0].mxu0
      %v766 = vadd.f32 %v702, %v765
      %v767 = vpop.f32.mrb[0].mxu0
      %768 = vmatprep.mubr.bf16.mxu0 0
      %769 = vmatmul.mubr.bf16.gmra.mrb[0].mxu0 %v587
      %v770 = vpop.f32.mrb[0].mxu0
      %v771 = vadd.f32 %v707, %v770
      %v772 = vpop.f32.mrb[0].mxu0
      %v773 = vpop.f32.mrb[0].mxu0
      %v774 = vadd.f32 %v710, %v773
      %v775 = vpop.f32.mrb[0].mxu0
      %776 = vmatprep.mubr.bf16.mxu0 0
      %777 = vmatmul.mubr.bf16.gmra.mrb[0].mxu0 %v590
      %v778 = vpop.f32.mrb[0].mxu0
      %v779 = vadd.f32 %v715, %v778
      %v780 = vpop.f32.mrb[0].mxu0
      %v781 = vpop.f32.mrb[0].mxu0
      %v782 = vpop.f32.mrb[0].mxu0
      %783 = vdwg.mxu0
      %784 = vrot.lane.b32.xlu0 %v755, 64
      %v785 = vpop.permute.xlu0 %784
      %786 = vrot.lane.b32.xlu0 %v758, 64
      %v787 = vpop.permute.xlu0 %786
      %788 = vrot.lane.b32.xlu0 %v763, 64
      %v789 = vpop.permute.xlu0 %788
      %790 = vrot.lane.b32.xlu0 %v766, 64
      %v791 = vpop.permute.xlu0 %790
      %792 = vrot.lane.b32.xlu0 %v771, 64
      %v793 = vpop.permute.xlu0 %792
      %794 = vrot.lane.b32.xlu0 %v774, 64
      %v795 = vpop.permute.xlu0 %794
      %796 = vrot.lane.b32.xlu0 %v779, 64
      %v797 = vpop.permute.xlu0 %796
      %v798 = vmax.f32 %v755, %v785
      %v799 = vmax.f32 %v758, %v787
      %v800 = vmax.f32 %v763, %v789
      %v801 = vmax.f32 %v766, %v791
      %v802 = vmax.f32 %v771, %v793
      %v803 = vmax.f32 %v774, %v795
      %v804 = vmax.f32 %v779, %v797
      %805 = vrot.lane.b32.xlu0 %v798, 32
      %v806 = vpop.permute.xlu0 %805
      %807 = vrot.lane.b32.xlu0 %v799, 32
      %v808 = vpop.permute.xlu0 %807
      %809 = vrot.lane.b32.xlu0 %v800, 32
      %v810 = vpop.permute.xlu0 %809
      %811 = vrot.lane.b32.xlu0 %v801, 32
      %v812 = vpop.permute.xlu0 %811
      %813 = vrot.lane.b32.xlu0 %v802, 32
      %v814 = vpop.permute.xlu0 %813
      %815 = vrot.lane.b32.xlu0 %v803, 32
      %v816 = vpop.permute.xlu0 %815
      %817 = vrot.lane.b32.xlu0 %v804, 32
      %v818 = vpop.permute.xlu0 %817
      %v819 = vmax.f32 %v798, %v806
      %v820 = vmax.f32 %v799, %v808
      %v821 = vmax.f32 %v800, %v810
      %v822 = vmax.f32 %v801, %v812
      %v823 = vmax.f32 %v802, %v814
      %v824 = vmax.f32 %v803, %v816
      %v825 = vmax.f32 %v804, %v818
      %v826 = vld [vmem:[%s2] sm:$0x1]
      %v828 = vlaneseq
      %v829 = vshrl.u32 %v828, 7
      %v830 = vsub.s32 0, %v829
      %v831 = vrot.slane %v826, %v830
      %v833 = vadd.f32 %v819, %v831
      %v834 = vadd.f32 %v820, %v831
      %v835 = vadd.f32 %v821, %v831
      %v836 = vadd.f32 %v822, %v831
      %v837 = vadd.f32 %v823, %v831
      %v838 = vadd.f32 %v824, %v831
      %v839 = vadd.f32 %v825, %v831
      %v840 = vmax.f32 %v833, 0.0
      %v841 = vmax.f32 %v834, 0.0
      %v842 = vmax.f32 %v835, 0.0
      %v843 = vmax.f32 %v836, 0.0
      %v844 = vmax.f32 %v837, 0.0
      %v845 = vmax.f32 %v838, 0.0
      %v846 = vmax.f32 %v839, 0.0
      %v847 = vpack.c.bf16 %v841, %v840
      %v848 = vpack.c.bf16 %v843, %v842
      %v849 = vpack.c.bf16 %v845, %v844
      %v850 = vpack.c.bf16 %v846, %v846
      %v855 = vunpack.c.l.b16 %v847
      %v856 = vunpack.c.h.b16 %v847
      %v857 = vunpack.c.l.b16 %v848
      %v858 = vunpack.c.h.b16 %v848
      %v859 = vunpack.c.l.b16 %v849
      %v860 = vunpack.c.h.b16 %v849
      %v861 = vunpack.c.l.b16 %v850
      %v862 = vpack.c.b16 %v855, %v855
      %v863 = vpack.c.b16 %v856, %v856
      %v864 = vpack.c.b16 %v857, %v857
      %v865 = vpack.c.b16 %v858, %v858
      %v866 = vpack.c.b16 %v859, %v859
      %v867 = vpack.c.b16 %v860, %v860
      %v868 = vpack.c.b16 %v861, %v861
      %876 = vst [vmem:[%s175] sm:$0xf] %v862
      %877 = vst [vmem:[%s175 + $0x4] sm:$0xf] %v863
      %878 = vst [vmem:[%s175 + $0x8] sm:$0xf] %v864
      %879 = vst [vmem:[%s175 + $0xc] sm:$0xf] %v865
      %880 = vst [vmem:[%s175 + $0x10] sm:$0xf] %v866
      %881 = vst [vmem:[%s175 + $0x14] sm:$0xf] %v867
      %882 = vst [vmem:[%s175 + $0x18] sm:$0xf] %v868
      %s883 = smul.u32 7, %s14
      %p884 = scmp.lt.s32.totalorder %s883, 13
      %s885 = scalar_select %p884, %s883, 13
      %s886 = smul.addr %s885, 4
      %s887 = scalar_lea.vmem %s3, %s886
      // Predicated region
      $region33: #{cnn_forward.4} parent=31 // pred_check
        %p888 = pneg %p100
      $region34: #{cnn_forward.4} parent=31 // pred_check_branch
        %890 = sbr.rel (%p888) target = $region36
      $region35: #{cnn_forward.4} parent=31 // pred_region
        %s891 = smul.u32 7, %s14
      $region36: #{cnn_forward.4} parent=31 // pred_fallthru
        _
    $region32: #{cnn_forward.4} parent=5 // pred_fallthru
      _
    %p892 = scmp.le.s32.totalorder 2, %s9
    // Predicated region
    $region37: #{cnn_forward.4} parent=5 // pred_check
      %p893 = pneg %p892
    $region38: #{cnn_forward.4} parent=5 // pred_check_branch
      %895 = sbr.rel (%p893) target = $region40
    $region39: #{cnn_forward.4} parent=5 // pred_region
      %s896 = ssub.s32 %s9, 2
      // Predicated region
      $region41: #{cnn_forward.4} parent=39 // pred_check
        %p897 = pneg %p106
      $region42: #{cnn_forward.4} parent=39 // pred_check_branch
        %899 = sbr.rel (%p897) target = $region44
      $region43: #{cnn_forward.4} parent=39 // pred_region
        %s900 = smul.u32 7, %s15
        %p901 = scmp.lt.s32.totalorder %s900, 13
        %s902 = scalar_select %p901, %s900, 13
        %s903 = smul.addr %s902, 4
        %s904 = scalar_lea.vmem %s3, %s903
      $region44: #{cnn_forward.4} parent=39 // pred_fallthru
        _
    $region40: #{cnn_forward.4} parent=5 // pred_fallthru
      _
  $region6: #{cnn_forward.4} parent=0 // loop_footer
    %s13 = sadd.s32 1, %s9
  $region7: #{cnn_forward.4} parent=0 // loop_footer_branch
    %8 = sbr.rel target = $region3
  $region8: #{cnn_forward.4} parent=0 // loop_exit
    _

// kernel: cnn_forward.5
$region0: #{cnn_forward.5}
  #allocation0 [shape = 'u32[]', space=smem, size = 0x4, offset = 0x4, fixed_abs, tag = 'smem constant byte address 0x4 - core index']
  #allocation1 [shape = 'u32[144,128]{1,0:T(1,128)}', space=vmem, size = 0x12000, scoped, tag = 'internal scratch']
  %s0 = inlined_call_operand.vmem [shape: bf16[8,1568], index: 0, kind: input, shape index: {}]
  %s1 = inlined_call_operand.vmem [shape: bf16[1568,128], index: 1, kind: input, shape index: {}]
  %s2 = inlined_call_operand.vmem [shape: f32[1,128], index: 2, kind: input, shape index: {}]
  %s3 = inlined_call_operand.vmem [shape: f32[8,128], index: 3, kind: output, shape index: {}]
  %s4 = sld [smem:[#allocation0]]
  $region22: #{cnn_forward.5} parent=0
    _
  %s6 = ssub.s32 1, %s4
  %s7 = scalar_select 0, %s6, %s4
  // Predicated region
  $region2: #{cnn_forward.5} parent=0 // pred_check
    _
  $region3: #{cnn_forward.5} parent=0 // pred_check_branch
    %9 = sbr.rel (0) target = $region5
  $region4: #{cnn_forward.5} parent=0 // pred_region
    _
  $region5: #{cnn_forward.5} parent=0 // pred_fallthru
    _
  // Predicated region
  $region6: #{cnn_forward.5} parent=0 // pred_check
    _
  $region7: #{cnn_forward.5} parent=0 // pred_check_branch
    %11 = sbr.rel (0) target = $region9
  $region8: #{cnn_forward.5} parent=0 // pred_region
    _
  $region9: #{cnn_forward.5} parent=0 // pred_fallthru
    _
  // Predicated region
  $region10: #{cnn_forward.5} parent=0 // pred_check
    _
  $region11: #{cnn_forward.5} parent=0 // pred_check_branch
    %13 = sbr.rel (0) target = $region13
  $region12: #{cnn_forward.5} parent=0 // pred_region
    _
  $region13: #{cnn_forward.5} parent=0 // pred_fallthru
    _
  %v15 = vld [vmem:[%s0] sm:$0xff]
  %v16 = vld [vmem:[%s0 + $0x8] sm:$0xff]
  %v17 = vld [vmem:[%s0 + $0x10] sm:$0xff]
  %v18 = vld [vmem:[%s0 + $0x18] sm:$0xff]
  %v19 = vld [vmem:[%s0 + $0x20] sm:$0xff]
  %v20 = vld [vmem:[%s0 + $0x28] sm:$0xff]
  %v21 = vld [vmem:[%s0 + $0x30] sm:$0xf]
  %v22 = vld [vmem:[%s1] sm:$0xf]
  %v23 = vld [vmem:[%s1 + $0x4] sm:$0xf]
  %v24 = vld [vmem:[%s1 + $0x8] sm:$0xf]
  %v25 = vld [vmem:[%s1 + $0xc] sm:$0xf]
  %v26 = vld [vmem:[%s1 + $0x10] sm:$0xf]
  %v27 = vld [vmem:[%s1 + $0x14] sm:$0xf]
  %v28 = vld [vmem:[%s1 + $0x18] sm:$0xf]
  %v29 = vld [vmem:[%s1 + $0x1c] sm:$0xf]
  %v30 = vld [vmem:[%s1 + $0x20] sm:$0xf]
  %v31 = vld [vmem:[%s1 + $0x24] sm:$0xf]
  %v32 = vld [vmem:[%s1 + $0x28] sm:$0xf]
  %v33 = vld [vmem:[%s1 + $0x2c] sm:$0xf]
  %v34 = vld [vmem:[%s1 + $0x30] sm:$0xf]
  %v35 = vld [vmem:[%s1 + $0x34] sm:$0xf]
  %v36 = vld [vmem:[%s1 + $0x38] sm:$0xf]
  %v37 = vld [vmem:[%s1 + $0x3c] sm:$0xf]
  %v38 = vld [vmem:[%s1 + $0x40] sm:$0xf]
  %v39 = vld [vmem:[%s1 + $0x44] sm:$0xf]
  %v40 = vld [vmem:[%s1 + $0x48] sm:$0xf]
  %v41 = vld [vmem:[%s1 + $0x4c] sm:$0xf]
  %v42 = vld [vmem:[%s1 + $0x50] sm:$0xf]
  %v43 = vld [vmem:[%s1 + $0x54] sm:$0xf]
  %v44 = vld [vmem:[%s1 + $0x58] sm:$0xf]
  %v45 = vld [vmem:[%s1 + $0x5c] sm:$0xf]
  %v46 = vld [vmem:[%s1 + $0x60] sm:$0xf]
  %v47 = vld [vmem:[%s1 + $0x64] sm:$0xf]
  %v48 = vld [vmem:[%s1 + $0x68] sm:$0xf]
  %v49 = vld [vmem:[%s1 + $0x6c] sm:$0xf]
  %v50 = vld [vmem:[%s1 + $0x70] sm:$0xf]
  %v51 = vld [vmem:[%s1 + $0x74] sm:$0xf]
  %v52 = vld [vmem:[%s1 + $0x78] sm:$0xf]
  %v53 = vld [vmem:[%s1 + $0x7c] sm:$0xf]
  %v54 = vld [vmem:[%s1 + $0x80] sm:$0xf]
  %v55 = vld [vmem:[%s1 + $0x84] sm:$0xf]
  %v56 = vld [vmem:[%s1 + $0x88] sm:$0xf]
  %v57 = vld [vmem:[%s1 + $0x8c] sm:$0xf]
  %v58 = vld [vmem:[%s1 + $0x90] sm:$0xf]
  %v59 = vld [vmem:[%s1 + $0x94] sm:$0xf]
  %v60 = vld [vmem:[%s1 + $0x98] sm:$0xf]
  %v61 = vld [vmem:[%s1 + $0x9c] sm:$0xf]
  %v62 = vld [vmem:[%s1 + $0xa0] sm:$0xf]
  %v63 = vld [vmem:[%s1 + $0xa4] sm:$0xf]
  %v64 = vld [vmem:[%s1 + $0xa8] sm:$0xf]
  %v65 = vld [vmem:[%s1 + $0xac] sm:$0xf]
  %v66 = vld [vmem:[%s1 + $0xb0] sm:$0xf]
  %v67 = vld [vmem:[%s1 + $0xb4] sm:$0xf]
  %v68 = vld [vmem:[%s1 + $0xb8] sm:$0xf]
  %v69 = vld [vmem:[%s1 + $0xbc] sm:$0xf]
  %v70 = vld [vmem:[%s1 + $0xc0] sm:$0xf]
  %v71 = vld [vmem:[%s1 + $0xc4] sm:$0xf]
  %v72 = vld [vmem:[%s1 + $0xc8] sm:$0xf]
  %v73 = vld [vmem:[%s1 + $0xcc] sm:$0xf]
  %v74 = vld [vmem:[%s1 + $0xd0] sm:$0xf]
  %v75 = vld [vmem:[%s1 + $0xd4] sm:$0xf]
  %v76 = vld [vmem:[%s1 + $0xd8] sm:$0xf]
  %v77 = vld [vmem:[%s1 + $0xdc] sm:$0xf]
  %v78 = vld [vmem:[%s1 + $0xe0] sm:$0xf]
  %v79 = vld [vmem:[%s1 + $0xe4] sm:$0xf]
  %v80 = vld [vmem:[%s1 + $0xe8] sm:$0xf]
  %v81 = vld [vmem:[%s1 + $0xec] sm:$0xf]
  %v82 = vld [vmem:[%s1 + $0xf0] sm:$0xf]
  %v83 = vld [vmem:[%s1 + $0xf4] sm:$0xf]
  %v84 = vld [vmem:[%s1 + $0xf8] sm:$0xf]
  %v85 = vld [vmem:[%s1 + $0xfc] sm:$0xf]
  %v86 = vld [vmem:[%s1 + $0x100] sm:$0xf]
  %v87 = vld [vmem:[%s1 + $0x104] sm:$0xf]
  %v88 = vld [vmem:[%s1 + $0x108] sm:$0xf]
  %v89 = vld [vmem:[%s1 + $0x10c] sm:$0xf]
  %v90 = vld [vmem:[%s1 + $0x110] sm:$0xf]
  %v91 = vld [vmem:[%s1 + $0x114] sm:$0xf]
  %v92 = vld [vmem:[%s1 + $0x118] sm:$0xf]
  %v93 = vld [vmem:[%s1 + $0x11c] sm:$0xf]
  %v94 = vld [vmem:[%s1 + $0x120] sm:$0xf]
  %v95 = vld [vmem:[%s1 + $0x124] sm:$0xf]
  %v96 = vld [vmem:[%s1 + $0x128] sm:$0xf]
  %v97 = vld [vmem:[%s1 + $0x12c] sm:$0xf]
  %v98 = vld [vmem:[%s1 + $0x130] sm:$0xf]
  %v99 = vld [vmem:[%s1 + $0x134] sm:$0xf]
  %v100 = vld [vmem:[%s1 + $0x138] sm:$0xf]
  %v101 = vld [vmem:[%s1 + $0x13c] sm:$0xf]
  %v102 = vld [vmem:[%s1 + $0x140] sm:$0xf]
  %v103 = vld [vmem:[%s1 + $0x144] sm:$0xf]
  %v104 = vld [vmem:[%s1 + $0x148] sm:$0xf]
  %v105 = vld [vmem:[%s1 + $0x14c] sm:$0xf]
  %v106 = vld [vmem:[%s1 + $0x150] sm:$0xf]
  %v107 = vld [vmem:[%s1 + $0x154] sm:$0xf]
  %v108 = vld [vmem:[%s1 + $0x158] sm:$0xf]
  %v109 = vld [vmem:[%s1 + $0x15c] sm:$0xf]
  %v110 = vld [vmem:[%s1 + $0x160] sm:$0xf]
  %v111 = vld [vmem:[%s1 + $0x164] sm:$0xf]
  %v112 = vld [vmem:[%s1 + $0x168] sm:$0xf]
  %v113 = vld [vmem:[%s1 + $0x16c] sm:$0xf]
  %v114 = vld [vmem:[%s1 + $0x170] sm:$0xf]
  %v115 = vld [vmem:[%s1 + $0x174] sm:$0xf]
  %v116 = vld [vmem:[%s1 + $0x178] sm:$0xf]
  %v117 = vld [vmem:[%s1 + $0x17c] sm:$0xf]
  %v118 = vld [vmem:[%s1 + $0x180] sm:$0xf]
  %v119 = vld [vmem:[%s1 + $0x184] sm:$0xf]
  %v120 = vld [vmem:[%s1 + $0x188] sm:$0xf]
  %v121 = vld [vmem:[%s1 + $0x18c] sm:$0xf]
  %v122 = vld [vmem:[%s1 + $0x190] sm:$0xf]
  %v123 = vld [vmem:[%s1 + $0x194] sm:$0xf]
  %v124 = vld [vmem:[%s1 + $0x198] sm:$0xf]
  %v125 = vld [vmem:[%s1 + $0x19c] sm:$0xf]
  %v126 = vld [vmem:[%s1 + $0x1a0] sm:$0xf]
  %v127 = vld [vmem:[%s1 + $0x1a4] sm:$0xf]
  %v128 = vld [vmem:[%s1 + $0x1a8] sm:$0xf]
  %v129 = vld [vmem:[%s1 + $0x1ac] sm:$0xf]
  %v130 = vld [vmem:[%s1 + $0x1b0] sm:$0xf]
  %v131 = vld [vmem:[%s1 + $0x1b4] sm:$0xf]
  %v132 = vld [vmem:[%s1 + $0x1b8] sm:$0xf]
  %v133 = vld [vmem:[%s1 + $0x1bc] sm:$0xf]
  %v134 = vld [vmem:[%s1 + $0x1c0] sm:$0xf]
  %v135 = vld [vmem:[%s1 + $0x1c4] sm:$0xf]
  %v136 = vld [vmem:[%s1 + $0x1c8] sm:$0xf]
  %v137 = vld [vmem:[%s1 + $0x1cc] sm:$0xf]
  %v138 = vld [vmem:[%s1 + $0x1d0] sm:$0xf]
  %v139 = vld [vmem:[%s1 + $0x1d4] sm:$0xf]
  %v140 = vld [vmem:[%s1 + $0x1d8] sm:$0xf]
  %v141 = vld [vmem:[%s1 + $0x1dc] sm:$0xf]
  %v142 = vld [vmem:[%s1 + $0x1e0] sm:$0xf]
  %v143 = vld [vmem:[%s1 + $0x1e4] sm:$0xf]
  %v144 = vld [vmem:[%s1 + $0x1e8] sm:$0xf]
  %v145 = vld [vmem:[%s1 + $0x1ec] sm:$0xf]
  %v146 = vld [vmem:[%s1 + $0x1f0] sm:$0xf]
  %v147 = vld [vmem:[%s1 + $0x1f4] sm:$0xf]
  %v148 = vld [vmem:[%s1 + $0x1f8] sm:$0xf]
  %v149 = vld [vmem:[%s1 + $0x1fc] sm:$0xf]
  %v150 = vld [vmem:[%s1 + $0x200] sm:$0xf]
  %v151 = vld [vmem:[%s1 + $0x204] sm:$0xf]
  %v152 = vld [vmem:[%s1 + $0x208] sm:$0xf]
  %v153 = vld [vmem:[%s1 + $0x20c] sm:$0xf]
  %v154 = vld [vmem:[%s1 + $0x210] sm:$0xf]
  %v155 = vld [vmem:[%s1 + $0x214] sm:$0xf]
  %v156 = vld [vmem:[%s1 + $0x218] sm:$0xf]
  %v157 = vld [vmem:[%s1 + $0x21c] sm:$0xf]
  %v158 = vld [vmem:[%s1 + $0x220] sm:$0xf]
  %v159 = vld [vmem:[%s1 + $0x224] sm:$0xf]
  %v160 = vld [vmem:[%s1 + $0x228] sm:$0xf]
  %v161 = vld [vmem:[%s1 + $0x22c] sm:$0xf]
  %v162 = vld [vmem:[%s1 + $0x230] sm:$0xf]
  %v163 = vld [vmem:[%s1 + $0x234] sm:$0xf]
  %v164 = vld [vmem:[%s1 + $0x238] sm:$0xf]
  %v165 = vld [vmem:[%s1 + $0x23c] sm:$0xf]
  %v166 = vld [vmem:[%s1 + $0x240] sm:$0xf]
  %v167 = vld [vmem:[%s1 + $0x244] sm:$0xf]
  %v168 = vld [vmem:[%s1 + $0x248] sm:$0xf]
  %v169 = vld [vmem:[%s1 + $0x24c] sm:$0xf]
  %v170 = vld [vmem:[%s1 + $0x250] sm:$0xf]
  %v171 = vld [vmem:[%s1 + $0x254] sm:$0xf]
  %v172 = vld [vmem:[%s1 + $0x258] sm:$0xf]
  %v173 = vld [vmem:[%s1 + $0x25c] sm:$0xf]
  %v174 = vld [vmem:[%s1 + $0x260] sm:$0xf]
  %v175 = vld [vmem:[%s1 + $0x264] sm:$0xf]
  %v176 = vld [vmem:[%s1 + $0x268] sm:$0xf]
  %v177 = vld [vmem:[%s1 + $0x26c] sm:$0xf]
  %v178 = vld [vmem:[%s1 + $0x270] sm:$0xf]
  %v179 = vld [vmem:[%s1 + $0x274] sm:$0xf]
  %v180 = vld [vmem:[%s1 + $0x278] sm:$0xf]
  %v181 = vld [vmem:[%s1 + $0x27c] sm:$0xf]
  %v182 = vld [vmem:[%s1 + $0x280] sm:$0xf]
  %v183 = vld [vmem:[%s1 + $0x284] sm:$0xf]
  %v184 = vld [vmem:[%s1 + $0x288] sm:$0xf]
  %v185 = vld [vmem:[%s1 + $0x28c] sm:$0xf]
  %v186 = vld [vmem:[%s1 + $0x290] sm:$0xf]
  %v187 = vld [vmem:[%s1 + $0x294] sm:$0xf]
  %v188 = vld [vmem:[%s1 + $0x298] sm:$0xf]
  %v189 = vld [vmem:[%s1 + $0x29c] sm:$0xf]
  %v190 = vld [vmem:[%s1 + $0x2a0] sm:$0xf]
  %v191 = vld [vmem:[%s1 + $0x2a4] sm:$0xf]
  %v192 = vld [vmem:[%s1 + $0x2a8] sm:$0xf]
  %v193 = vld [vmem:[%s1 + $0x2ac] sm:$0xf]
  %v194 = vld [vmem:[%s1 + $0x2b0] sm:$0xf]
  %v195 = vld [vmem:[%s1 + $0x2b4] sm:$0xf]
  %v196 = vld [vmem:[%s1 + $0x2b8] sm:$0xf]
  %v197 = vld [vmem:[%s1 + $0x2bc] sm:$0xf]
  %v198 = vld [vmem:[%s1 + $0x2c0] sm:$0xf]
  %v199 = vld [vmem:[%s1 + $0x2c4] sm:$0xf]
  %v200 = vld [vmem:[%s1 + $0x2c8] sm:$0xf]
  %v201 = vld [vmem:[%s1 + $0x2cc] sm:$0xf]
  %v202 = vld [vmem:[%s1 + $0x2d0] sm:$0xf]
  %v203 = vld [vmem:[%s1 + $0x2d4] sm:$0xf]
  %v204 = vld [vmem:[%s1 + $0x2d8] sm:$0xf]
  %v205 = vld [vmem:[%s1 + $0x2dc] sm:$0xf]
  %v206 = vld [vmem:[%s1 + $0x2e0] sm:$0xf]
  %v207 = vld [vmem:[%s1 + $0x2e4] sm:$0xf]
  %v208 = vld [vmem:[%s1 + $0x2e8] sm:$0xf]
  %v209 = vld [vmem:[%s1 + $0x2ec] sm:$0xf]
  %v210 = vld [vmem:[%s1 + $0x2f0] sm:$0xf]
  %v211 = vld [vmem:[%s1 + $0x2f4] sm:$0xf]
  %v212 = vld [vmem:[%s1 + $0x2f8] sm:$0xf]
  %v213 = vld [vmem:[%s1 + $0x2fc] sm:$0xf]
  %v214 = vld [vmem:[%s1 + $0x300] sm:$0xf]
  %v215 = vld [vmem:[%s1 + $0x304] sm:$0xf]
  %v216 = vld [vmem:[%s1 + $0x308] sm:$0xf]
  %v217 = vld [vmem:[%s1 + $0x30c] sm:$0xf]
  %v218 = vld [vmem:[%s2] sm:$0x1]
  %v220 = vlaneseq
  %v221 = vshrl.u32 %v220, 7
  %v222 = vsub.s32 0, %v221
  %v223 = vrot.slane %v218, %v222
  %v232 = vunpack.c.l.b16 %v15
  %v233 = vunpack.c.h.b16 %v15
  %v234 = vunpack.c.l.b16 %v16
  %v235 = vunpack.c.h.b16 %v16
  %v236 = vunpack.c.l.b16 %v17
  %v237 = vunpack.c.h.b16 %v17
  %v238 = vunpack.c.l.b16 %v18
  %v239 = vunpack.c.h.b16 %v18
  %v240 = vunpack.c.l.b16 %v19
  %v241 = vunpack.c.h.b16 %v19
  %v242 = vunpack.c.l.b16 %v20
  %v243 = vunpack.c.h.b16 %v20
  %v244 = vunpack.c.l.b16 %v21
  %v245 = vpack.c.b16 %v232, %v232
  %v246 = vpack.c.b16 %v233, %v233
  %v247 = vpack.c.b16 %v234, %v234
  %v248 = vpack.c.b16 %v235, %v235
  %v249 = vpack.c.b16 %v236, %v236
  %v250 = vpack.c.b16 %v237, %v237
  %v251 = vpack.c.b16 %v238, %v238
  %v252 = vpack.c.b16 %v239, %v239
  %v253 = vpack.c.b16 %v240, %v240
  %v254 = vpack.c.b16 %v241, %v241
  %v255 = vpack.c.b16 %v242, %v242
  %v256 = vpack.c.b16 %v243, %v243
  %v257 = vpack.c.b16 %v244, %v244
  %v466 = vunpack.c.l.b16 %v22
  %v467 = vunpack.c.l.b16 %v23
  %v468 = vunpack.c.l.b16 %v24
  %v469 = vunpack.c.l.b16 %v25
  %v470 = vunpack.c.l.b16 %v26
  %v471 = vunpack.c.l.b16 %v27
  %v472 = vunpack.c.l.b16 %v28
  %v473 = vunpack.c.l.b16 %v29
  %v474 = vunpack.c.l.b16 %v30
  %v475 = vunpack.c.l.b16 %v31
  %v476 = vunpack.c.l.b16 %v32
  %v477 = vunpack.c.l.b16 %v33
  %v478 = vunpack.c.l.b16 %v34
  %v479 = vunpack.c.l.b16 %v35
  %v480 = vunpack.c.l.b16 %v36
  %v481 = vunpack.c.l.b16 %v37
  %v482 = vunpack.c.l.b16 %v38
  %v483 = vunpack.c.l.b16 %v39
  %v484 = vunpack.c.l.b16 %v40
  %v485 = vunpack.c.l.b16 %v41
  %v486 = vunpack.c.l.b16 %v42
  %v487 = vunpack.c.l.b16 %v43
  %v488 = vunpack.c.l.b16 %v44
  %v489 = vunpack.c.l.b16 %v45
  %v490 = vunpack.c.l.b16 %v46
  %v491 = vunpack.c.l.b16 %v47
  %v492 = vunpack.c.l.b16 %v48
  %v493 = vunpack.c.l.b16 %v49
  %v494 = vunpack.c.l.b16 %v50
  %v495 = vunpack.c.l.b16 %v51
  %v496 = vunpack.c.l.b16 %v52
  %v497 = vunpack.c.l.b16 %v53
  %v498 = vunpack.c.l.b16 %v54
  %v499 = vunpack.c.l.b16 %v55
  %v500 = vunpack.c.l.b16 %v56
  %v501 = vunpack.c.l.b16 %v57
  %v502 = vunpack.c.l.b16 %v58
  %v503 = vunpack.c.l.b16 %v59
  %v504 = vunpack.c.l.b16 %v60
  %v505 = vunpack.c.l.b16 %v61
  %v506 = vunpack.c.l.b16 %v62
  %v507 = vunpack.c.l.b16 %v63
  %v508 = vunpack.c.l.b16 %v64
  %v509 = vunpack.c.l.b16 %v65
  %v510 = vunpack.c.l.b16 %v66
  %v511 = vunpack.c.l.b16 %v67
  %v512 = vunpack.c.l.b16 %v68
  %v513 = vunpack.c.l.b16 %v69
  %v514 = vunpack.c.l.b16 %v70
  %v515 = vunpack.c.l.b16 %v71
  %v516 = vunpack.c.l.b16 %v72
  %v517 = vunpack.c.l.b16 %v73
  %v518 = vunpack.c.l.b16 %v74
  %v519 = vunpack.c.l.b16 %v75
  %v520 = vunpack.c.l.b16 %v76
  %v521 = vunpack.c.l.b16 %v77
  %v522 = vunpack.c.l.b16 %v78
  %v523 = vunpack.c.l.b16 %v79
  %v524 = vunpack.c.l.b16 %v80
  %v525 = vunpack.c.l.b16 %v81
  %v526 = vunpack.c.l.b16 %v82
  %v527 = vunpack.c.l.b16 %v83
  %v528 = vunpack.c.l.b16 %v84
  %v529 = vunpack.c.l.b16 %v85
  %v530 = vunpack.c.l.b16 %v86
  %v531 = vunpack.c.l.b16 %v87
  %v532 = vunpack.c.l.b16 %v88
  %v533 = vunpack.c.l.b16 %v89
  %v534 = vunpack.c.l.b16 %v90
  %v535 = vunpack.c.l.b16 %v91
  %v536 = vunpack.c.l.b16 %v92
  %v537 = vunpack.c.l.b16 %v93
  %v538 = vunpack.c.l.b16 %v94
  %v539 = vunpack.c.l.b16 %v95
  %v540 = vunpack.c.l.b16 %v96
  %v541 = vunpack.c.l.b16 %v97
  %v542 = vunpack.c.l.b16 %v98
  %v543 = vunpack.c.l.b16 %v99
  %v544 = vunpack.c.l.b16 %v100
  %v545 = vunpack.c.l.b16 %v101
  %v546 = vunpack.c.l.b16 %v102
  %v547 = vunpack.c.l.b16 %v103
  %v548 = vunpack.c.l.b16 %v104
  %v549 = vunpack.c.l.b16 %v105
  %v550 = vunpack.c.l.b16 %v106
  %v551 = vunpack.c.l.b16 %v107
  %v552 = vunpack.c.l.b16 %v108
  %v553 = vunpack.c.l.b16 %v109
  %v554 = vunpack.c.l.b16 %v110
  %v555 = vunpack.c.l.b16 %v111
  %v556 = vunpack.c.l.b16 %v112
  %v557 = vunpack.c.l.b16 %v113
  %v558 = vunpack.c.l.b16 %v114
  %v559 = vunpack.c.l.b16 %v115
  %v560 = vunpack.c.l.b16 %v116
  %v561 = vunpack.c.l.b16 %v117
  %v562 = vunpack.c.l.b16 %v118
  %v563 = vunpack.c.l.b16 %v119
  %v564 = vunpack.c.l.b16 %v120
  %v565 = vunpack.c.l.b16 %v121
  %v566 = vunpack.c.l.b16 %v122
  %v567 = vunpack.c.l.b16 %v123
  %v568 = vunpack.c.l.b16 %v124
  %v569 = vunpack.c.l.b16 %v125
  %v570 = vunpack.c.l.b16 %v126
  %v571 = vunpack.c.l.b16 %v127
  %v572 = vunpack.c.l.b16 %v128
  %v573 = vunpack.c.l.b16 %v129
  %v574 = vunpack.c.l.b16 %v130
  %v575 = vunpack.c.l.b16 %v131
  %v576 = vunpack.c.l.b16 %v132
  %v577 = vunpack.c.l.b16 %v133
  %v578 = vunpack.c.l.b16 %v134
  %v579 = vunpack.c.l.b16 %v135
  %v580 = vunpack.c.l.b16 %v136
  %v581 = vunpack.c.l.b16 %v137
  %v582 = vunpack.c.l.b16 %v138
  %v583 = vunpack.c.l.b16 %v139
  %v584 = vunpack.c.l.b16 %v140
  %v585 = vunpack.c.l.b16 %v141
  %v586 = vunpack.c.l.b16 %v142
  %v587 = vunpack.c.l.b16 %v143
  %v588 = vunpack.c.l.b16 %v144
  %v589 = vunpack.c.l.b16 %v145
  %v590 = vunpack.c.l.b16 %v146
  %v591 = vunpack.c.l.b16 %v147
  %v592 = vunpack.c.l.b16 %v148
  %v593 = vunpack.c.l.b16 %v149
  %v594 = vunpack.c.l.b16 %v150
  %v595 = vunpack.c.l.b16 %v151
  %v596 = vunpack.c.l.b16 %v152
  %v597 = vunpack.c.l.b16 %v153
  %v598 = vunpack.c.l.b16 %v154
  %v599 = vunpack.c.l.b16 %v155
  %v600 = vunpack.c.l.b16 %v156
  %v601 = vunpack.c.l.b16 %v157
  %v602 = vunpack.c.l.b16 %v158
  %v603 = vunpack.c.l.b16 %v159
  %v604 = vunpack.c.l.b16 %v160
  %v605 = vunpack.c.l.b16 %v161
  %v606 = vunpack.c.l.b16 %v162
  %v607 = vunpack.c.l.b16 %v163
  %v608 = vunpack.c.l.b16 %v164
  %v609 = vunpack.c.l.b16 %v165
  %v610 = vunpack.c.l.b16 %v166
  %v611 = vunpack.c.l.b16 %v167
  %v612 = vunpack.c.l.b16 %v168
  %v613 = vunpack.c.l.b16 %v169
  %v614 = vunpack.c.l.b16 %v170
  %v615 = vunpack.c.l.b16 %v171
  %v616 = vunpack.c.l.b16 %v172
  %v617 = vunpack.c.l.b16 %v173
  %v618 = vunpack.c.l.b16 %v174
  %v619 = vunpack.c.l.b16 %v175
  %v620 = vunpack.c.l.b16 %v176
  %v621 = vunpack.c.l.b16 %v177
  %v622 = vunpack.c.l.b16 %v178
  %v623 = vunpack.c.l.b16 %v179
  %v624 = vunpack.c.l.b16 %v180
  %v625 = vunpack.c.l.b16 %v181
  %v626 = vunpack.c.l.b16 %v182
  %v627 = vunpack.c.l.b16 %v183
  %v628 = vunpack.c.l.b16 %v184
  %v629 = vunpack.c.l.b16 %v185
  %v630 = vunpack.c.l.b16 %v186
  %v631 = vunpack.c.l.b16 %v187
  %v632 = vunpack.c.l.b16 %v188
  %v633 = vunpack.c.l.b16 %v189
  %v634 = vunpack.c.l.b16 %v190
  %v635 = vunpack.c.l.b16 %v191
  %v636 = vunpack.c.l.b16 %v192
  %v637 = vunpack.c.l.b16 %v193
  %v638 = vunpack.c.l.b16 %v194
  %v639 = vunpack.c.l.b16 %v195
  %v640 = vunpack.c.l.b16 %v196
  %v641 = vunpack.c.l.b16 %v197
  %v642 = vunpack.c.l.b16 %v198
  %v643 = vunpack.c.l.b16 %v199
  %v644 = vunpack.c.l.b16 %v200
  %v645 = vunpack.c.l.b16 %v201
  %v646 = vunpack.c.l.b16 %v202
  %v647 = vunpack.c.l.b16 %v203
  %v648 = vunpack.c.l.b16 %v204
  %v649 = vunpack.c.l.b16 %v205
  %v650 = vunpack.c.l.b16 %v206
  %v651 = vunpack.c.l.b16 %v207
  %v652 = vunpack.c.l.b16 %v208
  %v653 = vunpack.c.l.b16 %v209
  %v654 = vunpack.c.l.b16 %v210
  %v655 = vunpack.c.l.b16 %v211
  %v656 = vunpack.c.l.b16 %v212
  %v657 = vunpack.c.l.b16 %v213
  %v658 = vunpack.c.l.b16 %v214
  %v659 = vunpack.c.l.b16 %v215
  %v660 = vunpack.c.l.b16 %v216
  %v661 = vunpack.c.l.b16 %v217
  %v662 = vpack.c.b16 %v467, %v466
  %v663 = vpack.c.b16 %v469, %v468
  %v664 = vpack.c.b16 %v471, %v470
  %v665 = vpack.c.b16 %v473, %v472
  %v666 = vpack.c.b16 %v475, %v474
  %v667 = vpack.c.b16 %v477, %v476
  %v668 = vpack.c.b16 %v479, %v478
  %v669 = vpack.c.b16 %v481, %v480
  %v670 = vpack.c.b16 %v483, %v482
  %v671 = vpack.c.b16 %v485, %v484
  %v672 = vpack.c.b16 %v487, %v486
  %v673 = vpack.c.b16 %v489, %v488
  %v674 = vpack.c.b16 %v491, %v490
  %v675 = vpack.c.b16 %v493, %v492
  %v676 = vpack.c.b16 %v495, %v494
  %v677 = vpack.c.b16 %v497, %v496
  %v678 = vpack.c.b16 %v499, %v498
  %v679 = vpack.c.b16 %v501, %v500
  %v680 = vpack.c.b16 %v503, %v502
  %v681 = vpack.c.b16 %v505, %v504
  %v682 = vpack.c.b16 %v507, %v506
  %v683 = vpack.c.b16 %v509, %v508
  %v684 = vpack.c.b16 %v511, %v510
  %v685 = vpack.c.b16 %v513, %v512
  %v686 = vpack.c.b16 %v515, %v514
  %v687 = vpack.c.b16 %v517, %v516
  %v688 = vpack.c.b16 %v519, %v518
  %v689 = vpack.c.b16 %v521, %v520
  %v690 = vpack.c.b16 %v523, %v522
  %v691 = vpack.c.b16 %v525, %v524
  %v692 = vpack.c.b16 %v527, %v526
  %v693 = vpack.c.b16 %v529, %v528
  %v694 = vpack.c.b16 %v531, %v530
  %v695 = vpack.c.b16 %v533, %v532
  %v696 = vpack.c.b16 %v535, %v534
  %v697 = vpack.c.b16 %v537, %v536
  %v698 = vpack.c.b16 %v539, %v538
  %v699 = vpack.c.b16 %v541, %v540
  %v700 = vpack.c.b16 %v543, %v542
  %v701 = vpack.c.b16 %v545, %v544
  %v702 = vpack.c.b16 %v547, %v546
  %v703 = vpack.c.b16 %v549, %v548
  %v704 = vpack.c.b16 %v551, %v550
  %v705 = vpack.c.b16 %v553, %v552
  %v706 = vpack.c.b16 %v555, %v554
  %v707 = vpack.c.b16 %v557, %v556
  %v708 = vpack.c.b16 %v559, %v558
  %v709 = vpack.c.b16 %v561, %v560
  %v710 = vpack.c.b16 %v563, %v562
  %v711 = vpack.c.b16 %v565, %v564
  %v712 = vpack.c.b16 %v567, %v566
  %v713 = vpack.c.b16 %v569, %v568
  %v714 = vpack.c.b16 %v571, %v570
  %v715 = vpack.c.b16 %v573, %v572
  %v716 = vpack.c.b16 %v575, %v574
  %v717 = vpack.c.b16 %v577, %v576
  %v718 = vpack.c.b16 %v579, %v578
  %v719 = vpack.c.b16 %v581, %v580
  %v720 = vpack.c.b16 %v583, %v582
  %v721 = vpack.c.b16 %v585, %v584
  %v722 = vpack.c.b16 %v587, %v586
  %v723 = vpack.c.b16 %v589, %v588
  %v724 = vpack.c.b16 %v591, %v590
  %v725 = vpack.c.b16 %v593, %v592
  %v726 = vpack.c.b16 %v595, %v594
  %v727 = vpack.c.b16 %v597, %v596
  %v728 = vpack.c.b16 %v599, %v598
  %v729 = vpack.c.b16 %v601, %v600
  %v730 = vpack.c.b16 %v603, %v602
  %v731 = vpack.c.b16 %v605, %v604
  %v732 = vpack.c.b16 %v607, %v606
  %v733 = vpack.c.b16 %v609, %v608
  %v734 = vpack.c.b16 %v611, %v610
  %v735 = vpack.c.b16 %v613, %v612
  %v736 = vpack.c.b16 %v615, %v614
  %v737 = vpack.c.b16 %v617, %v616
  %v738 = vpack.c.b16 %v619, %v618
  %v739 = vpack.c.b16 %v621, %v620
  %v740 = vpack.c.b16 %v623, %v622
  %v741 = vpack.c.b16 %v625, %v624
  %v742 = vpack.c.b16 %v627, %v626
  %v743 = vpack.c.b16 %v629, %v628
  %v744 = vpack.c.b16 %v631, %v630
  %v745 = vpack.c.b16 %v633, %v632
  %v746 = vpack.c.b16 %v635, %v634
  %v747 = vpack.c.b16 %v637, %v636
  %v748 = vpack.c.b16 %v639, %v638
  %v749 = vpack.c.b16 %v641, %v640
  %v750 = vpack.c.b16 %v643, %v642
  %v751 = vpack.c.b16 %v645, %v644
  %v752 = vpack.c.b16 %v647, %v646
  %v753 = vpack.c.b16 %v649, %v648
  %v754 = vpack.c.b16 %v651, %v650
  %v755 = vpack.c.b16 %v653, %v652
  %v756 = vpack.c.b16 %v655, %v654
  %v757 = vpack.c.b16 %v657, %v656
  %v758 = vpack.c.b16 %v659, %v658
  %v759 = vpack.c.b16 %v661, %v660
  %vm858 = vcmask 261120
  %v860 = vsel %vm858, %v257, 0
  %862 = vmatprep.subr.bf16.mxu0 0
  %863 = vmatpush1.bf16.msra.mxu0 %v662
  %864 = vmatprep.subr.bf16.mxu0 0
  %865 = vmatpush1.bf16.msra.mxu0 %v663
  %866 = vmatprep.subr.bf16.mxu0 0
  %867 = vmatpush1.bf16.msra.mxu0 %v664
  %868 = vmatprep.subr.bf16.mxu0 0
  %869 = vmatpush1.bf16.msra.mxu0 %v665
  %870 = vmatprep.subr.bf16.mxu0 0
  %871 = vmatpush1.bf16.msra.mxu0 %v666
  %872 = vmatprep.subr.bf16.mxu0 0
  %873 = vmatpush1.bf16.msra.mxu0 %v667
  %874 = vmatprep.subr.bf16.mxu0 0
  %875 = vmatpush1.bf16.msra.mxu0 %v668
  %876 = vmatprep.subr.bf16.mxu0 0
  %877 = vmatpush1.bf16.msra.mxu0 %v669
  %878 = vmatprep.subr.bf16.mxu0 0
  %879 = vmatpush1.bf16.msra.mxu0 %v670
  %880 = vmatprep.subr.bf16.mxu0 0
  %881 = vmatpush1.bf16.msra.mxu0 %v671
  %882 = vmatprep.subr.bf16.mxu0 0
  %883 = vmatpush1.bf16.msra.mxu0 %v672
  %884 = vmatprep.subr.bf16.mxu0 0
  %885 = vmatpush1.bf16.msra.mxu0 %v673
  %886 = vmatprep.subr.bf16.mxu0 0
  %887 = vmatpush1.bf16.msra.mxu0 %v674
  %888 = vmatprep.subr.bf16.mxu0 0
  %889 = vmatpush1.bf16.msra.mxu0 %v675
  %890 = vmatprep.subr.bf16.mxu0 0
  %891 = vmatpush1.bf16.msra.mxu0 %v676
  %892 = vmatprep.subr.bf16.mxu0 0
  %893 = vmatpush1.bf16.msra.mxu0 %v677
  %894 = vmatprep.mubr.bf16.mxu0 %v246
  %895 = vmatmul.mubr.bf16.gmra.mrb[0].mxu0 %v245
  %v896 = vpop.f32.mrb[0].mxu0
  %v897 = vadd.f32 %v223, %v896
  %v898 = vpop.f32.mrb[0].mxu0
  %v899 = vpop.f32.mrb[0].mxu0
  %v900 = vpop.f32.mrb[0].mxu0
  %901 = vdwg.mxu0
  %902 = vmatprep.subr.bf16.mxu0 0
  %903 = vmatpush1.bf16.msra.mxu0 %v678
  %904 = vmatprep.subr.bf16.mxu0 0
  %905 = vmatpush1.bf16.msra.mxu0 %v679
  %906 = vmatprep.subr.bf16.mxu0 0
  %907 = vmatpush1.bf16.msra.mxu0 %v680
  %908 = vmatprep.subr.bf16.mxu0 0
  %909 = vmatpush1.bf16.msra.mxu0 %v681
  %910 = vmatprep.subr.bf16.mxu0 0
  %911 = vmatpush1.bf16.msra.mxu0 %v682
  %912 = vmatprep.subr.bf16.mxu0 0
  %913 = vmatpush1.bf16.msra.mxu0 %v683
  %914 = vmatprep.subr.bf16.mxu0 0
  %915 = vmatpush1.bf16.msra.mxu0 %v684
  %916 = vmatprep.subr.bf16.mxu0 0
  %917 = vmatpush1.bf16.msra.mxu0 %v685
  %918 = vmatprep.subr.bf16.mxu0 0
  %919 = vmatpush1.bf16.msra.mxu0 %v686
  %920 = vmatprep.subr.bf16.mxu0 0
  %921 = vmatpush1.bf16.msra.mxu0 %v687
  %922 = vmatprep.subr.bf16.mxu0 0
  %923 = vmatpush1.bf16.msra.mxu0 %v688
  %924 = vmatprep.subr.bf16.mxu0 0
  %925 = vmatpush1.bf16.msra.mxu0 %v689
  %926 = vmatprep.subr.bf16.mxu0 0
  %927 = vmatpush1.bf16.msra.mxu0 %v690
  %928 = vmatprep.subr.bf16.mxu0 0
  %929 = vmatpush1.bf16.msra.mxu0 %v691
  %930 = vmatprep.subr.bf16.mxu0 0
  %931 = vmatpush1.bf16.msra.mxu0 %v692
  %932 = vmatprep.subr.bf16.mxu0 0
  %933 = vmatpush1.bf16.msra.mxu0 %v693
  %934 = vmatprep.mubr.bf16.mxu0 %v248
  %935 = vmatmul.mubr.bf16.gmra.mrb[0].mxu0 %v247
  %v936 = vpop.f32.mrb[0].mxu0
  %v937 = vadd.f32 %v897, %v936
  %v938 = vpop.f32.mrb[0].mxu0
  %v939 = vpop.f32.mrb[0].mxu0
  %v940 = vpop.f32.mrb[0].mxu0
  %941 = vdwg.mxu0
  %942 = vmatprep.subr.bf16.mxu0 0
  %943 = vmatpush1.bf16.msra.mxu0 %v694
  %944 = vmatprep.subr.bf16.mxu0 0
  %945 = vmatpush1.bf16.msra.mxu0 %v695
  %946 = vmatprep.subr.bf16.mxu0 0
  %947 = vmatpush1.bf16.msra.mxu0 %v696
  %948 = vmatprep.subr.bf16.mxu0 0
  %949 = vmatpush1.bf16.msra.mxu0 %v697
  %950 = vmatprep.subr.bf16.mxu0 0
  %951 = vmatpush1.bf16.msra.mxu0 %v698
  %952 = vmatprep.subr.bf16.mxu0 0
  %953 = vmatpush1.bf16.msra.mxu0 %v699
  %954 = vmatprep.subr.bf16.mxu0 0
  %955 = vmatpush1.bf16.msra.mxu0 %v700
  %956 = vmatprep.subr.bf16.mxu0 0
  %957 = vmatpush1.bf16.msra.mxu0 %v701
  %958 = vmatprep.subr.bf16.mxu0 0
  %959 = vmatpush1.bf16.msra.mxu0 %v702
  %960 = vmatprep.subr.bf16.mxu0 0
  %961 = vmatpush1.bf16.msra.mxu0 %v703
  %962 = vmatprep.subr.bf16.mxu0 0
  %963 = vmatpush1.bf16.msra.mxu0 %v704
  %964 = vmatprep.subr.bf16.mxu0 0
  %965 = vmatpush1.bf16.msra.mxu0 %v705
  %966 = vmatprep.subr.bf16.mxu0 0
  %967 = vmatpush1.bf16.msra.mxu0 %v706
  %968 = vmatprep.subr.bf16.mxu0 0
  %969 = vmatpush1.bf16.msra.mxu0 %v707
  %970 = vmatprep.subr.bf16.mxu0 0
  %971 = vmatpush1.bf16.msra.mxu0 %v708
  %972 = vmatprep.subr.bf16.mxu0 0
  %973 = vmatpush1.bf16.msra.mxu0 %v709
  %974 = vmatprep.mubr.bf16.mxu0 %v250
  %975 = vmatmul.mubr.bf16.gmra.mrb[0].mxu0 %v249
  %v976 = vpop.f32.mrb[0].mxu0
  %v977 = vadd.f32 %v937, %v976
  %v978 = vpop.f32.mrb[0].mxu0
  %v979 = vpop.f32.mrb[0].mxu0
  %v980 = vpop.f32.mrb[0].mxu0
  %981 = vdwg.mxu0
  %982 = vmatprep.subr.bf16.mxu0 0
  %983 = vmatpush1.bf16.msra.mxu0 %v710
  %984 = vmatprep.subr.bf16.mxu0 0
  %985 = vmatpush1.bf16.msra.mxu0 %v711
  %986 = vmatprep.subr.bf16.mxu0 0
  %987 = vmatpush1.bf16.msra.mxu0 %v712
  %988 = vmatprep.subr.bf16.mxu0 0
  %989 = vmatpush1.bf16.msra.mxu0 %v713
  %990 = vmatprep.subr.bf16.mxu0 0
  %991 = vmatpush1.bf16.msra.mxu0 %v714
  %992 = vmatprep.subr.bf16.mxu0 0
  %993 = vmatpush1.bf16.msra.mxu0 %v715
  %994 = vmatprep.subr.bf16.mxu0 0
  %995 = vmatpush1.bf16.msra.mxu0 %v716
  %996 = vmatprep.subr.bf16.mxu0 0
  %997 = vmatpush1.bf16.msra.mxu0 %v717
  %998 = vmatprep.subr.bf16.mxu0 0
  %999 = vmatpush1.bf16.msra.mxu0 %v718
  %1000 = vmatprep.subr.bf16.mxu0 0
  %1001 = vmatpush1.bf16.msra.mxu0 %v719
  %1002 = vmatprep.subr.bf16.mxu0 0
  %1003 = vmatpush1.bf16.msra.mxu0 %v720
  %1004 = vmatprep.subr.bf16.mxu0 0
  %1005 = vmatpush1.bf16.msra.mxu0 %v721
  %1006 = vmatprep.subr.bf16.mxu0 0
  %1007 = vmatpush1.bf16.msra.mxu0 %v722
  %1008 = vmatprep.subr.bf16.mxu0 0
  %1009 = vmatpush1.bf16.msra.mxu0 %v723
  %1010 = vmatprep.subr.bf16.mxu0 0
  %1011 = vmatpush1.bf16.msra.mxu0 %v724
  %1012 = vmatprep.subr.bf16.mxu0 0
  %1013 = vmatpush1.bf16.msra.mxu0 %v725
  %1014 = vmatprep.mubr.bf16.mxu0 %v252
  %1015 = vmatmul.mubr.bf16.gmra.mrb[0].mxu0 %v251
  %v1016 = vpop.f32.mrb[0].mxu0
  %v1017 = vadd.f32 %v977, %v1016
  %v1018 = vpop.f32.mrb[0].mxu0
  %v1019 = vpop.f32.mrb[0].mxu0
  %v1020 = vpop.f32.mrb[0].mxu0
  %1021 = vdwg.mxu0
  %1022 = vmatprep.subr.bf16.mxu0 0
  %1023 = vmatpush1.bf16.msra.mxu0 %v726
  %1024 = vmatprep.subr.bf16.mxu0 0
  %1025 = vmatpush1.bf16.msra.mxu0 %v727
  %1026 = vmatprep.subr.bf16.mxu0 0
  %1027 = vmatpush1.bf16.msra.mxu0 %v728
  %1028 = vmatprep.subr.bf16.mxu0 0
  %1029 = vmatpush1.bf16.msra.mxu0 %v729
  %1030 = vmatprep.subr.bf16.mxu0 0
  %1031 = vmatpush1.bf16.msra.mxu0 %v730
  %1032 = vmatprep.subr.bf16.mxu0 0
  %1033 = vmatpush1.bf16.msra.mxu0 %v731
  %1034 = vmatprep.subr.bf16.mxu0 0
  %1035 = vmatpush1.bf16.msra.mxu0 %v732
  %1036 = vmatprep.subr.bf16.mxu0 0
  %1037 = vmatpush1.bf16.msra.mxu0 %v733
  %1038 = vmatprep.subr.bf16.mxu0 0
  %1039 = vmatpush1.bf16.msra.mxu0 %v734
  %1040 = vmatprep.subr.bf16.mxu0 0
  %1041 = vmatpush1.bf16.msra.mxu0 %v735
  %1042 = vmatprep.subr.bf16.mxu0 0
  %1043 = vmatpush1.bf16.msra.mxu0 %v736
  %1044 = vmatprep.subr.bf16.mxu0 0
  %1045 = vmatpush1.bf16.msra.mxu0 %v737
  %1046 = vmatprep.subr.bf16.mxu0 0
  %1047 = vmatpush1.bf16.msra.mxu0 %v738
  %1048 = vmatprep.subr.bf16.mxu0 0
  %1049 = vmatpush1.bf16.msra.mxu0 %v739
  %1050 = vmatprep.subr.bf16.mxu0 0
  %1051 = vmatpush1.bf16.msra.mxu0 %v740
  %1052 = vmatprep.subr.bf16.mxu0 0
  %1053 = vmatpush1.bf16.msra.mxu0 %v741
  %1054 = vmatprep.mubr.bf16.mxu0 %v254
  %1055 = vmatmul.mubr.bf16.gmra.mrb[0].mxu0 %v253
  %v1056 = vpop.f32.mrb[0].mxu0
  %v1057 = vadd.f32 %v1017, %v1056
  %v1058 = vpop.f32.mrb[0].mxu0
  %v1059 = vpop.f32.mrb[0].mxu0
  %v1060 = vpop.f32.mrb[0].mxu0
  %1061 = vdwg.mxu0
  %1062 = vmatprep.subr.bf16.mxu0 0
  %1063 = vmatpush1.bf16.msra.mxu0 %v742
  %1064 = vmatprep.subr.bf16.mxu0 0
  %1065 = vmatpush1.bf16.msra.mxu0 %v743
  %1066 = vmatprep.subr.bf16.mxu0 0
  %1067 = vmatpush1.bf16.msra.mxu0 %v744
  %1068 = vmatprep.subr.bf16.mxu0 0
  %1069 = vmatpush1.bf16.msra.mxu0 %v745
  %1070 = vmatprep.subr.bf16.mxu0 0
  %1071 = vmatpush1.bf16.msra.mxu0 %v746
  %1072 = vmatprep.subr.bf16.mxu0 0
  %1073 = vmatpush1.bf16.msra.mxu0 %v747
  %1074 = vmatprep.subr.bf16.mxu0 0
  %1075 = vmatpush1.bf16.msra.mxu0 %v748
  %1076 = vmatprep.subr.bf16.mxu0 0
  %1077 = vmatpush1.bf16.msra.mxu0 %v749
  %1078 = vmatprep.subr.bf16.mxu0 0
  %1079 = vmatpush1.bf16.msra.mxu0 %v750
  %1080 = vmatprep.subr.bf16.mxu0 0
  %1081 = vmatpush1.bf16.msra.mxu0 %v751
  %1082 = vmatprep.subr.bf16.mxu0 0
  %1083 = vmatpush1.bf16.msra.mxu0 %v752
  %1084 = vmatprep.subr.bf16.mxu0 0
  %1085 = vmatpush1.bf16.msra.mxu0 %v753
  %1086 = vmatprep.subr.bf16.mxu0 0
  %1087 = vmatpush1.bf16.msra.mxu0 %v754
  %1088 = vmatprep.subr.bf16.mxu0 0
  %1089 = vmatpush1.bf16.msra.mxu0 %v755
  %1090 = vmatprep.subr.bf16.mxu0 0
  %1091 = vmatpush1.bf16.msra.mxu0 %v756
  %1092 = vmatprep.subr.bf16.mxu0 0
  %1093 = vmatpush1.bf16.msra.mxu0 %v757
  %1094 = vmatprep.mubr.bf16.mxu0 %v256
  %1095 = vmatmul.mubr.bf16.gmra.mrb[0].mxu0 %v255
  %v1096 = vpop.f32.mrb[0].mxu0
  %v1097 = vadd.f32 %v1057, %v1096
  %v1098 = vpop.f32.mrb[0].mxu0
  %v1099 = vpop.f32.mrb[0].mxu0
  %v1100 = vpop.f32.mrb[0].mxu0
  %1101 = vdwg.mxu0
  %1102 = vmatprep.subr.bf16.mxu0 0
  %1103 = vmatpush1.bf16.msra.mxu0 %v758
  %1104 = vmatprep.subr.bf16.mxu0 0
  %1105 = vmatpush1.bf16.msra.mxu0 %v759
  %1106 = vmatprep.subr.bf16.mxu0 0
  %1107 = vmatpush1.bf16.msra.mxu0 0
  %1108 = vmatprep.subr.bf16.mxu0 0
  %1109 = vmatpush1.bf16.msra.mxu0 0
  %1110 = vmatprep.subr.bf16.mxu0 0
  %1111 = vmatpush1.bf16.msra.mxu0 0
  %1112 = vmatprep.subr.bf16.mxu0 0
  %1113 = vmatpush1.bf16.msra.mxu0 0
  %1114 = vmatprep.subr.bf16.mxu0 0
  %1115 = vmatpush1.bf16.msra.mxu0 0
  %1116 = vmatprep.subr.bf16.mxu0 0
  %1117 = vmatpush1.bf16.msra.mxu0 0
  %1118 = vmatprep.subr.bf16.mxu0 0
  %1119 = vmatpush1.bf16.msra.mxu0 0
  %1120 = vmatprep.subr.bf16.mxu0 0
  %1121 = vmatpush1.bf16.msra.mxu0 0
  %1122 = vmatprep.subr.bf16.mxu0 0
  %1123 = vmatpush1.bf16.msra.mxu0 0
  %1124 = vmatprep.subr.bf16.mxu0 0
  %1125 = vmatpush1.bf16.msra.mxu0 0
  %1126 = vmatprep.subr.bf16.mxu0 0
  %1127 = vmatpush1.bf16.msra.mxu0 0
  %1128 = vmatprep.subr.bf16.mxu0 0
  %1129 = vmatpush1.bf16.msra.mxu0 0
  %1130 = vmatprep.subr.bf16.mxu0 0
  %1131 = vmatpush1.bf16.msra.mxu0 0
  %1132 = vmatprep.subr.bf16.mxu0 0
  %1133 = vmatpush1.bf16.msra.mxu0 0
  %1134 = vmatprep.mubr.bf16.mxu0 0
  %1135 = vmatmul.mubr.bf16.gmra.mrb[0].mxu0 %v860
  %v1136 = vpop.f32.mrb[0].mxu0
  %v1137 = vadd.f32 %v1097, %v1136
  %v1138 = vpop.f32.mrb[0].mxu0
  %v1139 = vpop.f32.mrb[0].mxu0
  %v1140 = vpop.f32.mrb[0].mxu0
  %1141 = vdwg.mxu0
  %1142 = vmax.xlane.f32.xlu0 %v1137
  %v1143 = vpop.xlane.xlu0 %1142
  %v1144 = vsub.f32 %v1137, %v1143
  %v1145 = vmul.f32 %v1144, 1.442695
  %v1146 = vpow.pop %v1145
  %1147 = vadd.xlane.f32.xlu0 %v1146
  %v1148 = vpop.xlane.xlu0 %1147
  %v1149 = vrcp.pop %v1148
  %v1150 = vmul.f32 %v1146, %v1149
  %1151 = vst [vmem:[%s3] sm:$0xff] %v1150
  // Predicated region
  $region14: #{cnn_forward.5} parent=0 // pred_check
    _
  $region15: #{cnn_forward.5} parent=0 // pred_check_branch
    %1153 = sbr.rel (0) target = $region17
  $region16: #{cnn_forward.5} parent=0 // pred_region
    _
  $region17: #{cnn_forward.5} parent=0 // pred_fallthru
    _
  // Predicated region
  $region18: #{cnn_forward.5} parent=0 // pred_check
    _
  $region19: #{cnn_forward.5} parent=0 // pred_check_branch
    %1155 = sbr.rel (0) target = $region21
  $region20: #{cnn_forward.5} parent=0 // pred_region
    _
  $region21: #{cnn_forward.5} parent=0 // pred_fallthru
    _

</llo_original>
